<compile_context>
chip_gen: v6e
topology: v6e:2x2x1
jax: 0.10.0
libtpu: 0.0.40
codegen_flags: <defaults>
</compile_context>

<pallas_src>
import functools

import jax
import jax.numpy as jnp
from jax import lax
from jax.experimental import pallas as pl
from jax.experimental.pallas import tpu as pltpu

SCALE_REACH = 10.0   # `scale = 10.0` in MetaEmbedding_Classifier (reachability)
SCALE_COS = 16.0     # CosNorm_Classifier default scale

_LANE = 128
_SUBLANE = 8


def _round_up(n, m):
    return (n + m - 1) // m * m


def _device_kind():
    try:
        return jax.devices()[0].device_kind.lower()
    except Exception:
        return ""


def _physical_vmem_bytes(kind):
    try:
        return int(pltpu.get_tpu_info().vmem_capacity_bytes)
    except Exception:
        # v7x has 64 MiB per TensorCore; v5e/v6e have 128 MiB.
        return (64 << 20) if "v7" in kind else (128 << 20)


def _pick_batch_tile(B, kind, requested=None):
    """Generation-aware batch tile (rows per grid step)."""
    if requested is None:
        # v5e: 128-row tiles match the 128-wide MXU and its small scoped-VMEM default.
        # v6e / v7x: larger tiles amortize the ~0.35us per-grid-step overhead.
        requested = 128 if "v5" in kind else 256
    if B <= requested:
        tb = _round_up(B, _SUBLANE)
        # v7x has 2 TensorCores: when the batch allows it, keep >= 2 grid steps so
        # the ("parallel",) batch axis can be sharded across both cores.
        if "v7" in kind and tb >= 2 * _SUBLANE:
            tb = _round_up(pl.cdiv(B, 2), _SUBLANE)
        return tb
    tb = requested
    if "v7" in kind:
        while tb > 128 and pl.cdiv(B, tb) < 2:
            tb //= 2
    return tb


def _vmem_limit_bytes(TB, Dp, Cp, kind, weight_bufs):
    """Derive the scoped-VMEM limit from the actual buffer sizes (+ headroom)."""
    bf16, f32 = 2, 4
    n_fused = 2 * Cp + Dp
    weights = (Dp * n_fused + Cp * Dp + Dp * Cp) * bf16 + (2 * Cp + Dp) * f32
    weights *= weight_bufs
    io = 2 * TB * Dp * f32 + 2 * 2 * TB * Cp * f32          # x tile + two outputs (double-buffered)
    interm = TB * (n_fused + 4 * Dp + 4 * Cp) * f32          # `big`, x/x_new/sel/mem, softmax temps
    limit = int((weights + io + interm) * 1.25) + (8 << 20)  # ~25% + 8 MiB compiler scratch headroom
    phys = _physical_vmem_bytes(kind)
    return max(16 << 20, min(limit, int(phys * 0.8)))


def _meta_embedding_kernel(x_ref, wT_ref, cent_ref, bh_ref, bs_ref, c2_ref, ewT_ref,
                           logits_ref, vmem_ref, *, num_classes, cp):
    """One batch tile of the MetaEmbedding forward.

    x_ref      : (TB, Dp)          f32   direct_feature tile (pipelined)
    wT_ref     : (Dp, 2*Cp + Dp)   bf16  [w_hall^T | centroids^T | w_sel^T] columns (resident)
    cent_ref   : (Cp, Dp)          bf16  centroids (keys_memory) (resident)
    bh_ref     : (1, Cp)           f32   fc_hallucinator bias (padded)
    bs_ref     : (1, Dp)           f32   fc_selector bias (padded)
    c2_ref     : (1, Cp)           f32   per-centroid squared norms (precomputed)
    ewT_ref    : (Dp, Cp)          bf16  row-normalized cos-classifier weights, transposed
    logits_ref : (TB, Cp)          f32   cos-norm logits
    vmem_ref   : (TB, Cp)          f32   values_memory (hallucinator softmax)
    """
    x = x_ref[...]                                    # (TB, Dp) f32
    xb = x.astype(jnp.bfloat16)

    # One fused MXU pass for all x-side contractions; canonical (M,K)@(K,N) layout,
    # so no in-kernel transpose of the resident weight block is ever needed.
    big = jnp.dot(xb, wT_ref[...], preferred_element_type=jnp.float32)  # (TB, 2Cp+Dp)

    h = big[:, :cp] + bh_ref[...]                     # hallucinator logits (TB, Cp)
    xc = big[:, cp:2 * cp]                            # x . centroids       (TB, Cp)
    sel_pre = big[:, 2 * cp:] + bs_ref[...]           # selector pre-act    (TB, Dp)

    # Mask for padded (fake) class columns.
    col = lax.broadcasted_iota(jnp.int32, (1, cp), 1)
    valid = col < num_classes                         # (1, Cp)

    # ---- fc_hallucinator softmax -> values_memory (exact division: rows sum to 1) ----
    h = jnp.where(valid, h, jnp.float32(-1e30))
    h_max = jnp.max(h, axis=1, keepdims=True)
    e = jnp.exp(h - h_max)
    denom = jnp.sum(e, axis=1, keepdims=True)
    values_memory = e / denom                         # (TB, Cp)
    vmem_ref[...] = values_memory

    # ---- memory feature: values_memory @ keys_memory (canonical contraction) ----
    memory_feature = jnp.dot(values_memory.astype(jnp.bfloat16), cent_ref[...],
                             preferred_element_type=jnp.float32)        # (TB, Dp)

    # ---- concept selector ----
    concept_selector = jnp.tanh(sel_pre)              # (TB, Dp)

    # ---- reachability: scale / min_j ||x - c_j||  (min of squared dists + rsqrt) ----
    # NOTE: x.c comes from the bf16 MXU pass; min-VALUE error is bounded by the dot
    # error, good to ~1e-3 relative. TODO(synk): f32 distance pass if bitwise parity
    # with the torch reference is ever required.
    x2 = jnp.sum(x * x, axis=1, keepdims=True)        # (TB, 1)
    d2 = x2 + c2_ref[...] - 2.0 * xc                  # (TB, Cp)
    d2 = jnp.where(valid, d2, jnp.inf)
    min_d2 = jnp.maximum(jnp.min(d2, axis=1, keepdims=True), jnp.float32(1e-12))
    reachability = SCALE_REACH * lax.rsqrt(min_d2)    # (TB, 1)

    # ---- infused feature ----
    x_new = reachability * (x + concept_selector * memory_feature)      # (TB, Dp)

    # ---- CosNorm classifier: scale * (n/(1+n)) * (x_new/n) @ ew^T ----
    nsq = jnp.sum(x_new * x_new, axis=1, keepdims=True)
    norm_x = jnp.sqrt(nsq)
    row_scale = SCALE_COS / (1.0 + norm_x)            # (TB, 1)
    ex = (x_new * row_scale).astype(jnp.bfloat16)     # (TB, Dp)
    logits_ref[...] = jnp.dot(ex, ewT_ref[...], preferred_element_type=jnp.float32)


def classify_atten_forward(x, centroids, w_hall, b_hall, w_sel, b_sel, w_cos,
                           *, batch_tile=None):
    """Pallas/TPU forward matching classify_atten.forward.

    Args use torch layouts (weights are (out_features, in_features)).
    Returns (raw_logits (B, C), fea (B, D), values_memory (B, C)).
    """
    x = jnp.asarray(x, jnp.float32)
    B, D = x.shape
    C = centroids.shape[0]

    b_hall = jnp.asarray(b_hall, jnp.float32).reshape(1, C)
    b_sel = jnp.asarray(b_sel, jnp.float32).reshape(1, D)

    # Lane/sublane-friendly padded sizes + generation-aware batch tile.
    kind = _device_kind()
    Cp = _round_up(C, _LANE)
    Dp = _round_up(D, _LANE)
    TB = _pick_batch_tile(B, kind, batch_tile)
    Bp = _round_up(B, TB)

    def pad2(a, rows, cols):
        return jnp.pad(a, ((0, rows - a.shape[0]), (0, cols - a.shape[1])))

    x_p = pad2(x, Bp, Dp)
    cent_p = pad2(jnp.asarray(centroids, jnp.float32), Cp, Dp)
    w_hall_p = pad2(jnp.asarray(w_hall, jnp.float32), Cp, Dp)
    w_sel_p = pad2(jnp.asarray(w_sel, jnp.float32), Dp, Dp)
    w_cos_p = pad2(jnp.asarray(w_cos, jnp.float32), Cp, Dp)
    b_hall_p = pad2(b_hall, 1, Cp)
    b_sel_p = pad2(b_sel, 1, Dp)

    # Input-independent precomputation hoisted out of the kernel (one-time XLA ops):
    #   * stacked AND pre-transposed bf16 weights so all kernel matmuls are canonical
    #   * bf16 centroids for the memory-feature matmul
    #   * centroid squared norms
    #   * row-normalized + transposed cosine-classifier weights
    w_stack = jnp.concatenate([w_hall_p, cent_p, w_sel_p], axis=0)         # (2Cp+Dp, Dp)
    w_fused_T = w_stack.astype(jnp.bfloat16).T                             # (Dp, 2Cp+Dp)
    cent_b16 = cent_p.astype(jnp.bfloat16)                                 # (Cp, Dp)
    c2 = jnp.sum(cent_p * cent_p, axis=1, keepdims=True).T                 # (1, Cp)
    w_cos_nrm = w_cos_p * lax.rsqrt(
        jnp.maximum(jnp.sum(w_cos_p * w_cos_p, axis=1, keepdims=True), 1e-30))
    ew_T = w_cos_nrm.astype(jnp.bfloat16).T                                # (Dp, Cp)

    kernel = functools.partial(_meta_embedding_kernel, num_classes=C, cp=Cp)

    def _launch(single_buffer_weights):
        def resident(shape):
            idx = lambda *_: (0,) * len(shape)
            if single_buffer_weights:
                # Grid-invariant operands: single-buffer to halve their VMEM footprint
                # (the fused weight block alone is ~10.5 MB bf16 at real shapes).
                return pl.BlockSpec(shape, idx, pipeline_mode=pl.Buffered(1))
            return pl.BlockSpec(shape, idx)

        return pl.pallas_call(
            kernel,
            grid=(Bp // TB,),
            in_specs=[
                pl.BlockSpec((TB, Dp), lambda i: (i, 0)),       # x tile (pipelined)
                resident((Dp, 2 * Cp + Dp)),                    # fused weights^T (resident)
                resident((Cp, Dp)),                             # centroids / keys_memory
                resident((1, Cp)),                              # b_hall
                resident((1, Dp)),                              # b_sel
                resident((1, Cp)),                              # centroid squared norms
                resident((Dp, Cp)),                             # normalized cos weights^T
            ],
            out_specs=(
                pl.BlockSpec((TB, Cp), lambda i: (i, 0)),
                pl.BlockSpec((TB, Cp), lambda i: (i, 0)),
            ),
            out_shape=(jax.ShapeDtypeStruct((Bp, Cp), jnp.float32),
                       jax.ShapeDtypeStruct((Bp, Cp), jnp.float32)),
            compiler_params=pltpu.CompilerParams(
                dimension_semantics=("parallel",),
                vmem_limit_bytes=_vmem_limit_bytes(
                    TB, Dp, Cp, kind, 1 if single_buffer_weights else 2)),
        )(x_p, w_fused_T, cent_b16, b_hall_p, b_sel_p, c2, ew_T)

    try:
        logits_p, vmem_p = _launch(True)
    except Exception:
        # pl.Buffered(1) unsupported on this jax version / execution mode: fall back
        # to default double-buffering (identical results, only costs extra VMEM).
        logits_p, vmem_p = _launch(False)

    raw_logits = logits_p[:B, :C]
    values_memory = vmem_p[:B, :C]
    return raw_logits, x, values_memory


def _reference_forward(x, centroids, w_hall, b_hall, w_sel, b_sel, w_cos):
    """Pure-JAX f32 reference of the same forward (for numeric validation)."""
    x = jnp.asarray(x, jnp.float32)
    h = x @ w_hall.T + b_hall
    values_memory = jax.nn.softmax(h, axis=1)
    memory_feature = values_memory @ centroids
    concept_selector = jnp.tanh(x @ w_sel.T + b_sel)
    dist = jnp.sqrt(jnp.sum((x[:, None, :] - centroids[None, :, :]) ** 2, axis=-1))
    reach = SCALE_REACH / jnp.min(dist, axis=1, keepdims=True)
    x_new = reach * (x + concept_selector * memory_feature)
    w_n = w_cos / jnp.linalg.norm(w_cos, axis=1, keepdims=True)
    nx = jnp.linalg.norm(x_new, axis=1, keepdims=True)
    logits = (SCALE_COS / (1.0 + nx) * x_new) @ w_n.T
    return logits, x, values_memory


if __name__ == "__main__":
    # Small shapes consistent with the module (real module: classes=200, feat_dim=2048).
    B, FEAT_DIM, NUM_CLASSES = 8, 256, 200

    key = jax.random.PRNGKey(0)
    k_x, k_cent, k_wh, k_ws, k_wc = jax.random.split(key, 5)

    x = jax.random.normal(k_x, (B, FEAT_DIM), jnp.float32)
    # TODO(synk): real centroids come from centroids_cal over a pretrained backbone
    # plus labelled data; use deterministic synthetic centroids here instead.
    centroids = jax.random.normal(k_cent, (NUM_CLASSES, FEAT_DIM), jnp.float32)

    # MetaEmbedding_Classifier parameters (torch.nn.Linear layout: (out, in))
    w_hall = jax.random.normal(k_wh, (NUM_CLASSES, FEAT_DIM), jnp.float32) * 0.02
    b_hall = jnp.zeros((NUM_CLASSES,), jnp.float32)
    w_sel = jax.random.normal(k_ws, (FEAT_DIM, FEAT_DIM), jnp.float32) * 0.02
    b_sel = jnp.zeros((FEAT_DIM,), jnp.float32)
    # CosNorm_Classifier weight (init_std=0.001 in the original module)
    w_cos = jax.random.normal(k_wc, (NUM_CLASSES, FEAT_DIM), jnp.float32) * 0.001

    raw_logits, fea, values_memory = classify_atten_forward(
        x, centroids, w_hall, b_hall, w_sel, b_sel, w_cos)
    jax.block_until_ready((raw_logits, fea, values_memory))

    assert raw_logits.shape == (B, NUM_CLASSES)
    assert fea.shape == (B, FEAT_DIM)
    assert values_memory.shape == (B, NUM_CLASSES)
    assert bool(jnp.all(jnp.isfinite(raw_logits)))
    # Exact-division softmax: rows sum to 1 to float32 precision.
    assert bool(jnp.allclose(jnp.sum(values_memory, axis=1), 1.0, atol=1e-3))

    # Loose numeric parity vs. the f32 reference (kernel uses bf16 MXU operands).
    ref_logits, _, ref_vm = _reference_forward(
        x, centroids, w_hall, b_hall, w_sel, b_sel, w_cos)
    assert float(jnp.max(jnp.abs(values_memory - ref_vm))) < 5e-3
    rel = jnp.linalg.norm(raw_logits - ref_logits) / (jnp.linalg.norm(ref_logits) + 1e-12)
    assert float(rel) < 5e-2

    print("KERNEL_OK")
</pallas_src>

<mosaic_0001>
module attributes {stable_mosaic.version = 11 : i64} {
  func.func @_meta_embedding_kernel(%arg0: i32, %arg1: memref<8x256xf32, #tpu.memory_space<vmem>>, %arg2: memref<256x768xbf16, #tpu.memory_space<vmem>>, %arg3: memref<256x256xbf16, #tpu.memory_space<vmem>>, %arg4: memref<1x256xf32, #tpu.memory_space<vmem>>, %arg5: memref<1x256xf32, #tpu.memory_space<vmem>>, %arg6: memref<1x256xf32, #tpu.memory_space<vmem>>, %arg7: memref<256x256xbf16, #tpu.memory_space<vmem>>, %arg8: memref<8x256xf32, #tpu.memory_space<vmem>>, %arg9: memref<8x256xf32, #tpu.memory_space<vmem>>) attributes {dimension_semantics = [#tpu.dimension_semantics<parallel>], iteration_bounds = array<i64: 1>, scalar_prefetch = 0 : i64, scratch_operands = 0 : i64, tpu.core_type = #tpu.core_type<tc>, window_params = [{transform_indices = @transform_0, window_bounds = array<i64: 8, 256>}, {pipeline_mode = #tpu.pipeline_mode<synchronous>, transform_indices = @transform_1, window_bounds = array<i64: 256, 768>}, {pipeline_mode = #tpu.pipeline_mode<synchronous>, transform_indices = @transform_2, window_bounds = array<i64: 256, 256>}, {pipeline_mode = #tpu.pipeline_mode<synchronous>, transform_indices = @transform_3, window_bounds = array<i64: 1, 256>}, {pipeline_mode = #tpu.pipeline_mode<synchronous>, transform_indices = @transform_4, window_bounds = array<i64: 1, 256>}, {pipeline_mode = #tpu.pipeline_mode<synchronous>, transform_indices = @transform_5, window_bounds = array<i64: 1, 256>}, {pipeline_mode = #tpu.pipeline_mode<synchronous>, transform_indices = @transform_6, window_bounds = array<i64: 256, 256>}, {transform_indices = @transform_7, window_bounds = array<i64: 8, 256>}, {transform_indices = @transform_8, window_bounds = array<i64: 8, 256>}]} {
    %c0 = arith.constant 0 : index
    %c0_0 = arith.constant 0 : index
    %0 = vector.load %arg1[%c0, %c0_0] : memref<8x256xf32, #tpu.memory_space<vmem>>, vector<8x256xf32>
    %1 = arith.truncf %0 : vector<8x256xf32> to vector<8x256xbf16>
    %c0_1 = arith.constant 0 : index
    %c0_2 = arith.constant 0 : index
    %2 = vector.load %arg2[%c0_1, %c0_2] : memref<256x768xbf16, #tpu.memory_space<vmem>>, vector<256x768xbf16>
    %cst = arith.constant dense<0.000000e+00> : vector<8x768xf32>
    %3 = tpu.matmul %1, %2, %cst {dimension_numbers = #tpu.dot_dimension_numbers<[1], [0], [0], [1], [0, 0, 1, 1], [], []>} : vector<8x256xbf16>, vector<256x768xbf16>, vector<8x768xf32> -> vector<8x768xf32>
    %4 = vector.extract_strided_slice %3 {offsets = [0, 0], sizes = [8, 256], strides = [1, 1]} : vector<8x768xf32> to vector<8x256xf32>
    %c0_3 = arith.constant 0 : index
    %c0_4 = arith.constant 0 : index
    %5 = vector.load %arg4[%c0_3, %c0_4] : memref<1x256xf32, #tpu.memory_space<vmem>>, vector<1x256xf32>
    %6 = vector.broadcast %5 : vector<1x256xf32> to vector<8x256xf32>
    %7 = arith.addf %4, %6 : vector<8x256xf32>
    %8 = vector.extract_strided_slice %3 {offsets = [0, 256], sizes = [8, 256], strides = [1, 1]} : vector<8x768xf32> to vector<8x256xf32>
    %9 = vector.extract_strided_slice %3 {offsets = [0, 512], sizes = [8, 256], strides = [1, 1]} : vector<8x768xf32> to vector<8x256xf32>
    %c0_5 = arith.constant 0 : index
    %c0_6 = arith.constant 0 : index
    %10 = vector.load %arg5[%c0_5, %c0_6] : memref<1x256xf32, #tpu.memory_space<vmem>>, vector<1x256xf32>
    %11 = vector.broadcast %10 : vector<1x256xf32> to vector<8x256xf32>
    %12 = arith.addf %9, %11 : vector<8x256xf32>
    %13 = tpu.iota {dimensions = array<i32: 1>} : vector<1x256xi32>
    %c200_i32 = arith.constant 200 : i32
    %14 = vector.broadcast %c200_i32 : i32 to vector<1x256xi32>
    %15 = arith.cmpi slt, %13, %14 : vector<1x256xi32>
    %cst_7 = arith.constant -1.000000e+30 : f32
    %16 = vector.shape_cast %15 : vector<1x256xi1> to vector<1x256xi1>
    %17 = vector.broadcast %16 : vector<1x256xi1> to vector<8x256xi1>
    %18 = vector.broadcast %cst_7 : f32 to vector<8x256xf32>
    %19 = arith.select %17, %7, %18 : vector<8x256xi1>, vector<8x256xf32>
    %cst_8 = arith.constant dense<0xFF800000> : vector<8xf32>
    %20 = vector.multi_reduction <maximumf>, %19, %cst_8 [1] : vector<8x256xf32> to vector<8xf32>
    %21 = vector.shape_cast %20 : vector<8xf32> to vector<8x1xf32>
    %22 = vector.broadcast %21 : vector<8x1xf32> to vector<8x256xf32>
    %23 = arith.subf %19, %22 : vector<8x256xf32>
    %24 = math.exp %23 : vector<8x256xf32>
    %cst_9 = arith.constant dense<0.000000e+00> : vector<8xf32>
    %25 = vector.multi_reduction <add>, %24, %cst_9 [1] : vector<8x256xf32> to vector<8xf32>
    %26 = vector.shape_cast %25 : vector<8xf32> to vector<8x1xf32>
    %27 = vector.broadcast %26 : vector<8x1xf32> to vector<8x256xf32>
    %28 = arith.divf %24, %27 : vector<8x256xf32>
    %c0_10 = arith.constant 0 : index
    %c0_11 = arith.constant 0 : index
    %29 = vector.load %arg9[%c0_10, %c0_11] : memref<8x256xf32, #tpu.memory_space<vmem>>, vector<8x256xf32>
    tpu.vector_store %arg9[%c0_10, %c0_11], %28 {strides = array<i32>} : memref<8x256xf32, #tpu.memory_space<vmem>>, vector<8x256xf32>,
    %30 = arith.truncf %28 : vector<8x256xf32> to vector<8x256xbf16>
    %c0_12 = arith.constant 0 : index
    %c0_13 = arith.constant 0 : index
    %31 = vector.load %arg3[%c0_12, %c0_13] : memref<256x256xbf16, #tpu.memory_space<vmem>>, vector<256x256xbf16>
    %cst_14 = arith.constant dense<0.000000e+00> : vector<8x256xf32>
    %32 = tpu.matmul %30, %31, %cst_14 {dimension_numbers = #tpu.dot_dimension_numbers<[1], [0], [0], [1], [0, 0, 1, 1], [], []>} : vector<8x256xbf16>, vector<256x256xbf16>, vector<8x256xf32> -> vector<8x256xf32>
    %33 = math.tanh %12 : vector<8x256xf32>
    %34 = arith.mulf %0, %0 : vector<8x256xf32>
    %cst_15 = arith.constant dense<0.000000e+00> : vector<8xf32>
    %35 = vector.multi_reduction <add>, %34, %cst_15 [1] : vector<8x256xf32> to vector<8xf32>
    %36 = vector.shape_cast %35 : vector<8xf32> to vector<8x1xf32>
    %c0_16 = arith.constant 0 : index
    %c0_17 = arith.constant 0 : index
    %37 = vector.load %arg6[%c0_16, %c0_17] : memref<1x256xf32, #tpu.memory_space<vmem>>, vector<1x256xf32>
    %38 = vector.broadcast %36 : vector<8x1xf32> to vector<8x256xf32>
    %39 = vector.broadcast %37 : vector<1x256xf32> to vector<8x256xf32>
    %40 = arith.addf %38, %39 : vector<8x256xf32>
    %cst_18 = arith.constant 2.000000e+00 : f32
    %41 = vector.broadcast %cst_18 : f32 to vector<8x256xf32>
    %42 = arith.mulf %41, %8 : vector<8x256xf32>
    %43 = arith.subf %40, %42 : vector<8x256xf32>
    %cst_19 = arith.constant 0x7F800000 : f32
    %44 = vector.shape_cast %15 : vector<1x256xi1> to vector<1x256xi1>
    %45 = vector.broadcast %44 : vector<1x256xi1> to vector<8x256xi1>
    %46 = vector.broadcast %cst_19 : f32 to vector<8x256xf32>
    %47 = arith.select %45, %43, %46 : vector<8x256xi1>, vector<8x256xf32>
    %cst_20 = arith.constant dense<0x7F800000> : vector<8xf32>
    %48 = vector.multi_reduction <minimumf>, %47, %cst_20 [1] : vector<8x256xf32> to vector<8xf32>
    %49 = vector.shape_cast %48 : vector<8xf32> to vector<8x1xf32>
    %cst_21 = arith.constant 9.99999996E-13 : f32
    %50 = vector.broadcast %cst_21 : f32 to vector<8x1xf32>
    %51 = arith.maximumf %49, %50 : vector<8x1xf32>
    %52 = math.rsqrt %51 : vector<8x1xf32>
    %cst_22 = arith.constant 1.000000e+01 : f32
    %53 = vector.broadcast %cst_22 : f32 to vector<8x1xf32>
    %54 = arith.mulf %53, %52 : vector<8x1xf32>
    %55 = arith.mulf %33, %32 : vector<8x256xf32>
    %56 = arith.addf %0, %55 : vector<8x256xf32>
    %57 = vector.broadcast %54 : vector<8x1xf32> to vector<8x256xf32>
    %58 = arith.mulf %57, %56 : vector<8x256xf32>
    %59 = arith.mulf %58, %58 : vector<8x256xf32>
    %cst_23 = arith.constant dense<0.000000e+00> : vector<8xf32>
    %60 = vector.multi_reduction <add>, %59, %cst_23 [1] : vector<8x256xf32> to vector<8xf32>
    %61 = vector.shape_cast %60 : vector<8xf32> to vector<8x1xf32>
    %62 = math.sqrt %61 : vector<8x1xf32>
    %cst_24 = arith.constant 1.000000e+00 : f32
    %63 = vector.broadcast %cst_24 : f32 to vector<8x1xf32>
    %64 = arith.addf %63, %62 : vector<8x1xf32>
    %cst_25 = arith.constant 1.600000e+01 : f32
    %65 = vector.broadcast %cst_25 : f32 to vector<8x1xf32>
    %66 = arith.divf %65, %64 : vector<8x1xf32>
    %67 = vector.broadcast %66 : vector<8x1xf32> to vector<8x256xf32>
    %68 = arith.mulf %58, %67 : vector<8x256xf32>
    %69 = arith.truncf %68 : vector<8x256xf32> to vector<8x256xbf16>
    %c0_26 = arith.constant 0 : index
    %c0_27 = arith.constant 0 : index
    %70 = vector.load %arg7[%c0_26, %c0_27] : memref<256x256xbf16, #tpu.memory_space<vmem>>, vector<256x256xbf16>
    %cst_28 = arith.constant dense<0.000000e+00> : vector<8x256xf32>
    %71 = tpu.matmul %69, %70, %cst_28 {dimension_numbers = #tpu.dot_dimension_numbers<[1], [0], [0], [1], [0, 0, 1, 1], [], []>} : vector<8x256xbf16>, vector<256x256xbf16>, vector<8x256xf32> -> vector<8x256xf32>
    %c0_29 = arith.constant 0 : index
    %c0_30 = arith.constant 0 : index
    %72 = vector.load %arg8[%c0_29, %c0_30] : memref<8x256xf32, #tpu.memory_space<vmem>>, vector<8x256xf32>
    tpu.vector_store %arg8[%c0_29, %c0_30], %71 {strides = array<i32>} : memref<8x256xf32, #tpu.memory_space<vmem>>, vector<8x256xf32>,
    return
  }
  func.func @transform_0(%arg0: i32) -> (i32, i32) {
    %c0_i32 = arith.constant 0 : i32
    %c0_i32_0 = arith.constant 0 : i32
    return %arg0, %c0_i32 : i32, i32
  }
  func.func @transform_1(%arg0: i32) -> (i32, i32) {
    %c0_i32 = arith.constant 0 : i32
    %c0_i32_0 = arith.constant 0 : i32
    %c0_i32_1 = arith.constant 0 : i32
    return %c0_i32, %c0_i32_0 : i32, i32
  }
  func.func @transform_2(%arg0: i32) -> (i32, i32) {
    %c0_i32 = arith.constant 0 : i32
    %c0_i32_0 = arith.constant 0 : i32
    %c0_i32_1 = arith.constant 0 : i32
    return %c0_i32, %c0_i32_0 : i32, i32
  }
  func.func @transform_3(%arg0: i32) -> (i32, i32) {
    %c0_i32 = arith.constant 0 : i32
    %c0_i32_0 = arith.constant 0 : i32
    %c0_i32_1 = arith.constant 0 : i32
    return %c0_i32, %c0_i32_0 : i32, i32
  }
  func.func @transform_4(%arg0: i32) -> (i32, i32) {
    %c0_i32 = arith.constant 0 : i32
    %c0_i32_0 = arith.constant 0 : i32
    %c0_i32_1 = arith.constant 0 : i32
    return %c0_i32, %c0_i32_0 : i32, i32
  }
  func.func @transform_5(%arg0: i32) -> (i32, i32) {
    %c0_i32 = arith.constant 0 : i32
    %c0_i32_0 = arith.constant 0 : i32
    %c0_i32_1 = arith.constant 0 : i32
    return %c0_i32, %c0_i32_0 : i32, i32
  }
  func.func @transform_6(%arg0: i32) -> (i32, i32) {
    %c0_i32 = arith.constant 0 : i32
    %c0_i32_0 = arith.constant 0 : i32
    %c0_i32_1 = arith.constant 0 : i32
    return %c0_i32, %c0_i32_0 : i32, i32
  }
  func.func @transform_7(%arg0: i32) -> (i32, i32) {
    %c0_i32 = arith.constant 0 : i32
    %c0_i32_0 = arith.constant 0 : i32
    return %arg0, %c0_i32 : i32, i32
  }
  func.func @transform_8(%arg0: i32) -> (i32, i32) {
    %c0_i32 = arith.constant 0 : i32
    %c0_i32_0 = arith.constant 0 : i32
    return %arg0, %c0_i32 : i32, i32
  }
}

module attributes {stable_mosaic.version = 11 : i64} {
  func.func @_meta_embedding_kernel(%arg0: i32, %arg1: memref<8x256xf32, #tpu.memory_space<vmem>>, %arg2: memref<256x768xbf16, #tpu.memory_space<vmem>>, %arg3: memref<256x256xbf16, #tpu.memory_space<vmem>>, %arg4: memref<1x256xf32, #tpu.memory_space<vmem>>, %arg5: memref<1x256xf32, #tpu.memory_space<vmem>>, %arg6: memref<1x256xf32, #tpu.memory_space<vmem>>, %arg7: memref<256x256xbf16, #tpu.memory_space<vmem>>, %arg8: memref<8x256xf32, #tpu.memory_space<vmem>>, %arg9: memref<8x256xf32, #tpu.memory_space<vmem>>) attributes {dimension_semantics = [#tpu.dimension_semantics<parallel>], iteration_bounds = array<i64: 1>, scalar_prefetch = 0 : i64, scratch_operands = 0 : i64, tpu.core_type = #tpu.core_type<tc>, window_params = [{transform_indices = @transform_0, window_bounds = array<i64: 8, 256>}, {pipeline_mode = #tpu.pipeline_mode<synchronous>, transform_indices = @transform_1, window_bounds = array<i64: 256, 768>}, {pipeline_mode = #tpu.pipeline_mode<synchronous>, transform_indices = @transform_2, window_bounds = array<i64: 256, 256>}, {pipeline_mode = #tpu.pipeline_mode<synchronous>, transform_indices = @transform_3, window_bounds = array<i64: 1, 256>}, {pipeline_mode = #tpu.pipeline_mode<synchronous>, transform_indices = @transform_4, window_bounds = array<i64: 1, 256>}, {pipeline_mode = #tpu.pipeline_mode<synchronous>, transform_indices = @transform_5, window_bounds = array<i64: 1, 256>}, {pipeline_mode = #tpu.pipeline_mode<synchronous>, transform_indices = @transform_6, window_bounds = array<i64: 256, 256>}, {transform_indices = @transform_7, window_bounds = array<i64: 8, 256>}, {transform_indices = @transform_8, window_bounds = array<i64: 8, 256>}]} {
    %c0 = arith.constant 0 : index
    %c0_0 = arith.constant 0 : index
    %0 = vector.load %arg1[%c0, %c0_0] : memref<8x256xf32, #tpu.memory_space<vmem>>, vector<8x256xf32>
    %1 = arith.truncf %0 : vector<8x256xf32> to vector<8x256xbf16>
    %c0_1 = arith.constant 0 : index
    %c0_2 = arith.constant 0 : index
    %2 = vector.load %arg2[%c0_1, %c0_2] : memref<256x768xbf16, #tpu.memory_space<vmem>>, vector<256x768xbf16>
    %cst = arith.constant dense<0.000000e+00> : vector<8x768xf32>
    %3 = tpu.matmul %1, %2, %cst {dimension_numbers = #tpu.dot_dimension_numbers<[1], [0], [0], [1], [0, 0, 1, 1], [], []>} : vector<8x256xbf16>, vector<256x768xbf16>, vector<8x768xf32> -> vector<8x768xf32>
    %4 = vector.extract_strided_slice %3 {offsets = [0, 0], sizes = [8, 256], strides = [1, 1]} : vector<8x768xf32> to vector<8x256xf32>
    %c0_3 = arith.constant 0 : index
    %c0_4 = arith.constant 0 : index
    %5 = vector.load %arg4[%c0_3, %c0_4] : memref<1x256xf32, #tpu.memory_space<vmem>>, vector<1x256xf32>
    %6 = vector.broadcast %5 : vector<1x256xf32> to vector<8x256xf32>
    %7 = arith.addf %4, %6 : vector<8x256xf32>
    %8 = vector.extract_strided_slice %3 {offsets = [0, 256], sizes = [8, 256], strides = [1, 1]} : vector<8x768xf32> to vector<8x256xf32>
    %9 = vector.extract_strided_slice %3 {offsets = [0, 512], sizes = [8, 256], strides = [1, 1]} : vector<8x768xf32> to vector<8x256xf32>
    %c0_5 = arith.constant 0 : index
    %c0_6 = arith.constant 0 : index
    %10 = vector.load %arg5[%c0_5, %c0_6] : memref<1x256xf32, #tpu.memory_space<vmem>>, vector<1x256xf32>
    %11 = vector.broadcast %10 : vector<1x256xf32> to vector<8x256xf32>
    %12 = arith.addf %9, %11 : vector<8x256xf32>
    %13 = tpu.iota {dimensions = array<i32: 1>} : vector<1x256xi32>
    %c200_i32 = arith.constant 200 : i32
    %14 = vector.broadcast %c200_i32 : i32 to vector<1x256xi32>
    %15 = arith.cmpi slt, %13, %14 : vector<1x256xi32>
    %cst_7 = arith.constant -1.000000e+30 : f32
    %16 = vector.shape_cast %15 : vector<1x256xi1> to vector<1x256xi1>
    %17 = vector.broadcast %16 : vector<1x256xi1> to vector<8x256xi1>
    %18 = vector.broadcast %cst_7 : f32 to vector<8x256xf32>
    %19 = arith.select %17, %7, %18 : vector<8x256xi1>, vector<8x256xf32>
    %cst_8 = arith.constant dense<0xFF800000> : vector<8xf32>
    %20 = vector.multi_reduction <maximumf>, %19, %cst_8 [1] : vector<8x256xf32> to vector<8xf32>
    %21 = vector.shape_cast %20 : vector<8xf32> to vector<8x1xf32>
    %22 = vector.broadcast %21 : vector<8x1xf32> to vector<8x256xf32>
    %23 = arith.subf %19, %22 : vector<8x256xf32>
    %24 = math.exp %23 : vector<8x256xf32>
    %cst_9 = arith.constant dense<0.000000e+00> : vector<8xf32>
    %25 = vector.multi_reduction <add>, %24, %cst_9 [1] : vector<8x256xf32> to vector<8xf32>
    %26 = vector.shape_cast %25 : vector<8xf32> to vector<8x1xf32>
    %27 = vector.broadcast %26 : vector<8x1xf32> to vector<8x256xf32>
    %28 = arith.divf %24, %27 : vector<8x256xf32>
    %c0_10 = arith.constant 0 : index
    %c0_11 = arith.constant 0 : index
    %29 = vector.load %arg9[%c0_10, %c0_11] : memref<8x256xf32, #tpu.memory_space<vmem>>, vector<8x256xf32>
    tpu.vector_store %arg9[%c0_10, %c0_11], %28 {strides = array<i32>} : memref<8x256xf32, #tpu.memory_space<vmem>>, vector<8x256xf32>,
    %30 = arith.truncf %28 : vector<8x256xf32> to vector<8x256xbf16>
    %c0_12 = arith.constant 0 : index
    %c0_13 = arith.constant 0 : index
    %31 = vector.load %arg3[%c0_12, %c0_13] : memref<256x256xbf16, #tpu.memory_space<vmem>>, vector<256x256xbf16>
    %cst_14 = arith.constant dense<0.000000e+00> : vector<8x256xf32>
    %32 = tpu.matmul %30, %31, %cst_14 {dimension_numbers = #tpu.dot_dimension_numbers<[1], [0], [0], [1], [0, 0, 1, 1], [], []>} : vector<8x256xbf16>, vector<256x256xbf16>, vector<8x256xf32> -> vector<8x256xf32>
    %33 = math.tanh %12 : vector<8x256xf32>
    %34 = arith.mulf %0, %0 : vector<8x256xf32>
    %cst_15 = arith.constant dense<0.000000e+00> : vector<8xf32>
    %35 = vector.multi_reduction <add>, %34, %cst_15 [1] : vector<8x256xf32> to vector<8xf32>
    %36 = vector.shape_cast %35 : vector<8xf32> to vector<8x1xf32>
    %c0_16 = arith.constant 0 : index
    %c0_17 = arith.constant 0 : index
    %37 = vector.load %arg6[%c0_16, %c0_17] : memref<1x256xf32, #tpu.memory_space<vmem>>, vector<1x256xf32>
    %38 = vector.broadcast %36 : vector<8x1xf32> to vector<8x256xf32>
    %39 = vector.broadcast %37 : vector<1x256xf32> to vector<8x256xf32>
    %40 = arith.addf %38, %39 : vector<8x256xf32>
    %cst_18 = arith.constant 2.000000e+00 : f32
    %41 = vector.broadcast %cst_18 : f32 to vector<8x256xf32>
    %42 = arith.mulf %41, %8 : vector<8x256xf32>
    %43 = arith.subf %40, %42 : vector<8x256xf32>
    %cst_19 = arith.constant 0x7F800000 : f32
    %44 = vector.shape_cast %15 : vector<1x256xi1> to vector<1x256xi1>
    %45 = vector.broadcast %44 : vector<1x256xi1> to vector<8x256xi1>
    %46 = vector.broadcast %cst_19 : f32 to vector<8x256xf32>
    %47 = arith.select %45, %43, %46 : vector<8x256xi1>, vector<8x256xf32>
    %cst_20 = arith.constant dense<0x7F800000> : vector<8xf32>
    %48 = vector.multi_reduction <minimumf>, %47, %cst_20 [1] : vector<8x256xf32> to vector<8xf32>
    %49 = vector.shape_cast %48 : vector<8xf32> to vector<8x1xf32>
    %cst_21 = arith.constant 9.99999996E-13 : f32
    %50 = vector.broadcast %cst_21 : f32 to vector<8x1xf32>
    %51 = arith.maximumf %49, %50 : vector<8x1xf32>
    %52 = math.rsqrt %51 : vector<8x1xf32>
    %cst_22 = arith.constant 1.000000e+01 : f32
    %53 = vector.broadcast %cst_22 : f32 to vector<8x1xf32>
    %54 = arith.mulf %53, %52 : vector<8x1xf32>
    %55 = arith.mulf %33, %32 : vector<8x256xf32>
    %56 = arith.addf %0, %55 : vector<8x256xf32>
    %57 = vector.broadcast %54 : vector<8x1xf32> to vector<8x256xf32>
    %58 = arith.mulf %57, %56 : vector<8x256xf32>
    %59 = arith.mulf %58, %58 : vector<8x256xf32>
    %cst_23 = arith.constant dense<0.000000e+00> : vector<8xf32>
    %60 = vector.multi_reduction <add>, %59, %cst_23 [1] : vector<8x256xf32> to vector<8xf32>
    %61 = vector.shape_cast %60 : vector<8xf32> to vector<8x1xf32>
    %62 = math.sqrt %61 : vector<8x1xf32>
    %cst_24 = arith.constant 1.000000e+00 : f32
    %63 = vector.broadcast %cst_24 : f32 to vector<8x1xf32>
    %64 = arith.addf %63, %62 : vector<8x1xf32>
    %cst_25 = arith.constant 1.600000e+01 : f32
    %65 = vector.broadcast %cst_25 : f32 to vector<8x1xf32>
    %66 = arith.divf %65, %64 : vector<8x1xf32>
    %67 = vector.broadcast %66 : vector<8x1xf32> to vector<8x256xf32>
    %68 = arith.mulf %58, %67 : vector<8x256xf32>
    %69 = arith.truncf %68 : vector<8x256xf32> to vector<8x256xbf16>
    %c0_26 = arith.constant 0 : index
    %c0_27 = arith.constant 0 : index
    %70 = vector.load %arg7[%c0_26, %c0_27] : memref<256x256xbf16, #tpu.memory_space<vmem>>, vector<256x256xbf16>
    %cst_28 = arith.constant dense<0.000000e+00> : vector<8x256xf32>
    %71 = tpu.matmul %69, %70, %cst_28 {dimension_numbers = #tpu.dot_dimension_numbers<[1], [0], [0], [1], [0, 0, 1, 1], [], []>} : vector<8x256xbf16>, vector<256x256xbf16>, vector<8x256xf32> -> vector<8x256xf32>
    %c0_29 = arith.constant 0 : index
    %c0_30 = arith.constant 0 : index
    %72 = vector.load %arg8[%c0_29, %c0_30] : memref<8x256xf32, #tpu.memory_space<vmem>>, vector<8x256xf32>
    tpu.vector_store %arg8[%c0_29, %c0_30], %71 {strides = array<i32>} : memref<8x256xf32, #tpu.memory_space<vmem>>, vector<8x256xf32>,
    return
  }
  func.func @transform_0(%arg0: i32) -> (i32, i32) {
    %c0_i32 = arith.constant 0 : i32
    %c0_i32_0 = arith.constant 0 : i32
    return %arg0, %c0_i32 : i32, i32
  }
  func.func @transform_1(%arg0: i32) -> (i32, i32) {
    %c0_i32 = arith.constant 0 : i32
    %c0_i32_0 = arith.constant 0 : i32
    %c0_i32_1 = arith.constant 0 : i32
    return %c0_i32, %c0_i32_0 : i32, i32
  }
  func.func @transform_2(%arg0: i32) -> (i32, i32) {
    %c0_i32 = arith.constant 0 : i32
    %c0_i32_0 = arith.constant 0 : i32
    %c0_i32_1 = arith.constant 0 : i32
    return %c0_i32, %c0_i32_0 : i32, i32
  }
  func.func @transform_3(%arg0: i32) -> (i32, i32) {
    %c0_i32 = arith.constant 0 : i32
    %c0_i32_0 = arith.constant 0 : i32
    %c0_i32_1 = arith.constant 0 : i32
    return %c0_i32, %c0_i32_0 : i32, i32
  }
  func.func @transform_4(%arg0: i32) -> (i32, i32) {
    %c0_i32 = arith.constant 0 : i32
    %c0_i32_0 = arith.constant 0 : i32
    %c0_i32_1 = arith.constant 0 : i32
    return %c0_i32, %c0_i32_0 : i32, i32
  }
  func.func @transform_5(%arg0: i32) -> (i32, i32) {
    %c0_i32 = arith.constant 0 : i32
    %c0_i32_0 = arith.constant 0 : i32
    %c0_i32_1 = arith.constant 0 : i32
    return %c0_i32, %c0_i32_0 : i32, i32
  }
  func.func @transform_6(%arg0: i32) -> (i32, i32) {
    %c0_i32 = arith.constant 0 : i32
    %c0_i32_0 = arith.constant 0 : i32
    %c0_i32_1 = arith.constant 0 : i32
    return %c0_i32, %c0_i32_0 : i32, i32
  }
  func.func @transform_7(%arg0: i32) -> (i32, i32) {
    %c0_i32 = arith.constant 0 : i32
    %c0_i32_0 = arith.constant 0 : i32
    return %arg0, %c0_i32 : i32, i32
  }
  func.func @transform_8(%arg0: i32) -> (i32, i32) {
    %c0_i32 = arith.constant 0 : i32
    %c0_i32_0 = arith.constant 0 : i32
    return %arg0, %c0_i32 : i32, i32
  }
}

</mosaic_0001>

<llo_original>
// kernel: tpu_custom_call.1
$region0: #{tpu_custom_call.1}
  #allocation0 [shape = 'u32[]', space=smem, size = 0x4, offset = 0x4, fixed_abs, tag = 'smem constant byte address 0x4 - core index']
  #allocation1 [shape = 'u32[144,128]{1,0:T(1,128)}', space=vmem, size = 0x12000, scoped, tag = 'internal scratch']
  %s0 = inlined_call_operand.hbm [shape: f32[8,256], index: 0, kind: input, shape index: {}]
  %s1 = inlined_call_operand.hbm [shape: bf16[256,768], index: 1, kind: input, shape index: {}]
  %s2 = inlined_call_operand.hbm [shape: bf16[256,256], index: 2, kind: input, shape index: {}]
  %s3 = inlined_call_operand.vmem [shape: f32[1,256], index: 3, kind: input, shape index: {}]
  %s4 = inlined_call_operand.vmem [shape: f32[1,256], index: 4, kind: input, shape index: {}]
  %s5 = inlined_call_operand.vmem [shape: f32[1,256], index: 5, kind: input, shape index: {}]
  %s6 = inlined_call_operand.hbm [shape: bf16[256,256], index: 6, kind: input, shape index: {}]
  %s7 = inlined_call_operand.hbm [shape: f32[8,256], index: 7, kind: output, shape index: {0}]
  %s8 = inlined_call_operand.hbm [shape: f32[8,256], index: 8, kind: output, shape index: {1}]
  %9 = xla_tuple %s7, %s8
  %s10 = sld [smem:[#allocation0]]
  $region62: #{tpu_custom_call.1} parent=0
    _
  %s12 = ssub.s32 1, %s10
  %s13 = scalar_select 0, %s12, %s10
  $region1: #{tpu_custom_call.1} parent=0
    #allocation2 [shape = 'u8[8192]{0}', space=vmem, size = 0x2000, scoped, tag = 'input window, operand 0, single buffered']
    #allocation3 [shape = 's32[1]{0}', space=sflag, size = 0x4, scoped, tag = 'scoped memory for tpu_custom_call.1']
    #allocation4 [shape = 's32[1]{0}', space=sflag, size = 0x4, scoped, tag = 'scoped memory for tpu_custom_call.1']
    #allocation5 [shape = 'u8[393216]{0}', space=vmem, size = 0x60000, scoped, tag = 'input window, operand 1, single buffered']
    #allocation6 [shape = 's32[1]{0}', space=sflag, size = 0x4, scoped, tag = 'scoped memory for tpu_custom_call.1']
    #allocation7 [shape = 'u8[131072]{0}', space=vmem, size = 0x20000, scoped, tag = 'input window, operand 2, single buffered']
    #allocation8 [shape = 'u8[131072]{0}', space=vmem, size = 0x20000, scoped, tag = 'input window, operand 6, single buffered']
    #allocation9 [shape = 's32[1]{0}', space=sflag, size = 0x4, scoped, tag = 'scoped memory for tpu_custom_call.1']
    #allocation10 [shape = 'u8[8192]{0}', space=vmem, size = 0x2000, scoped, tag = 'output window, operand 0, single buffered']
    #allocation11 [shape = 'u8[8192]{0}', space=vmem, size = 0x2000, scoped, tag = 'output window, operand 1, single buffered']
    #allocation12 [shape = 's32[1]{0}', space=sflag, size = 0x4, scoped, tag = 'scoped memory for tpu_custom_call.1']
    %14 = vsyncpa [#allocation3], 0
    %15 = vsyncpa [#allocation6], 0
    %16 = vsyncpa [#allocation9], 0
    %17 = vsyncpa [#allocation4], 0
    %18 = vsyncpa [#allocation12], 0
    // Predicated region
    $region2: #{tpu_custom_call.1} parent=1 // pred_check
      _
    $region3: #{tpu_custom_call.1} parent=1 // pred_check_branch
      %20 = sbr.rel (0) target = $region5
    $region4: #{tpu_custom_call.1} parent=1 // pred_region
      %s22 = ssub.s32 256, 256
      %23 = vsyncadd [#allocation3], %s22
      %s25 = sshll.u32 [#allocation2], 4
      %s26 = int_to_ptr.vmem [resolvable:$true] %s25
      %28 = dma.hbm_to_vmem [thread:$0]  %s0, 256, %s26, [#allocation3]
    $region5: #{tpu_custom_call.1} parent=1 // pred_fallthru
      _
    // Predicated region
    $region6: #{tpu_custom_call.1} parent=1 // pred_check
      _
    $region7: #{tpu_custom_call.1} parent=1 // pred_check_branch
      %30 = sbr.rel (0) target = $region9
    $region8: #{tpu_custom_call.1} parent=1 // pred_region
      %s32 = ssub.s32 12288, 12288
      %33 = vsyncadd [#allocation6], %s32
      %s34 = sshll.u32 [#allocation5], 4
      %s35 = int_to_ptr.vmem [resolvable:$true] %s34
      %40 = dma.hbm_to_vmem [thread:$0]  %s1, 12288, %s35, [#allocation6], 384, 384, 24
    $region9: #{tpu_custom_call.1} parent=1 // pred_fallthru
      _
    // Predicated region
    $region10: #{tpu_custom_call.1} parent=1 // pred_check
      _
    $region11: #{tpu_custom_call.1} parent=1 // pred_check_branch
      %42 = sbr.rel (0) target = $region13
    $region12: #{tpu_custom_call.1} parent=1 // pred_region
      %s44 = ssub.s32 4096, 4096
      %45 = vsyncadd [#allocation6], %s44
      %s46 = sshll.u32 [#allocation7], 4
      %s47 = int_to_ptr.vmem [resolvable:$true] %s46
      %52 = dma.hbm_to_vmem [thread:$0]  %s2, 4096, %s47, [#allocation6], 128, 128, 8
    $region13: #{tpu_custom_call.1} parent=1 // pred_fallthru
      _
    // Predicated region
    $region14: #{tpu_custom_call.1} parent=1 // pred_check
      _
    $region15: #{tpu_custom_call.1} parent=1 // pred_check_branch
      %54 = sbr.rel (0) target = $region17
    $region16: #{tpu_custom_call.1} parent=1 // pred_region
      _
    $region17: #{tpu_custom_call.1} parent=1 // pred_fallthru
      _
    // Predicated region
    $region18: #{tpu_custom_call.1} parent=1 // pred_check
      _
    $region19: #{tpu_custom_call.1} parent=1 // pred_check_branch
      %56 = sbr.rel (0) target = $region21
    $region20: #{tpu_custom_call.1} parent=1 // pred_region
      _
    $region21: #{tpu_custom_call.1} parent=1 // pred_fallthru
      _
    // Predicated region
    $region22: #{tpu_custom_call.1} parent=1 // pred_check
      _
    $region23: #{tpu_custom_call.1} parent=1 // pred_check_branch
      %58 = sbr.rel (0) target = $region25
    $region24: #{tpu_custom_call.1} parent=1 // pred_region
      _
    $region25: #{tpu_custom_call.1} parent=1 // pred_fallthru
      _
    // Predicated region
    $region26: #{tpu_custom_call.1} parent=1 // pred_check
      _
    $region27: #{tpu_custom_call.1} parent=1 // pred_check_branch
      %60 = sbr.rel (0) target = $region29
    $region28: #{tpu_custom_call.1} parent=1 // pred_region
      %s62 = ssub.s32 4096, 4096
      %63 = vsyncadd [#allocation9], %s62
      %s64 = sshll.u32 [#allocation8], 4
      %s65 = int_to_ptr.vmem [resolvable:$true] %s64
      %70 = dma.hbm_to_vmem [thread:$0]  %s6, 4096, %s65, [#allocation9], 128, 128, 8
    $region29: #{tpu_custom_call.1} parent=1 // pred_fallthru
      _
    // Predicated region
    $region30: #{tpu_custom_call.1} parent=1 // pred_check
      _
    $region31: #{tpu_custom_call.1} parent=1 // pred_check_branch
      %72 = sbr.rel (0) target = $region33
    $region32: #{tpu_custom_call.1} parent=1 // pred_region
      %73 = dma.done [#allocation3], 256
    $region33: #{tpu_custom_call.1} parent=1 // pred_fallthru
      _
    // Predicated region
    $region34: #{tpu_custom_call.1} parent=1 // pred_check
      _
    $region35: #{tpu_custom_call.1} parent=1 // pred_check_branch
      %75 = sbr.rel (0) target = $region37
    $region36: #{tpu_custom_call.1} parent=1 // pred_region
      %76 = dma.done [#allocation6], 12288
    $region37: #{tpu_custom_call.1} parent=1 // pred_fallthru
      _
    // Predicated region
    $region38: #{tpu_custom_call.1} parent=1 // pred_check
      _
    $region39: #{tpu_custom_call.1} parent=1 // pred_check_branch
      %78 = sbr.rel (0) target = $region41
    $region40: #{tpu_custom_call.1} parent=1 // pred_region
      %79 = dma.done [#allocation6], 4096
    $region41: #{tpu_custom_call.1} parent=1 // pred_fallthru
      _
    // Predicated region
    $region42: #{tpu_custom_call.1} parent=1 // pred_check
      _
    $region43: #{tpu_custom_call.1} parent=1 // pred_check_branch
      %81 = sbr.rel (0) target = $region45
    $region44: #{tpu_custom_call.1} parent=1 // pred_region
      %82 = dma.done [#allocation9], 4096
    $region45: #{tpu_custom_call.1} parent=1 // pred_fallthru
      _
    %v83 = vld [vmem:[#allocation2] sm:$0xff]
    %v84 = vld [vmem:[#allocation2 + $0x8] sm:$0xff]
    %v85 = vpack.c.bf16 %v83, %v83
    %v86 = vpack.c.bf16 %v84, %v84
    %v87 = vld [vmem:[#allocation5] sm:$0xff]
    %v88 = vld [vmem:[#allocation5 + $0x8] sm:$0xff]
    %v89 = vld [vmem:[#allocation5 + $0x10] sm:$0xff]
    %v90 = vld [vmem:[#allocation5 + $0x18] sm:$0xff]
    %v91 = vld [vmem:[#allocation5 + $0x20] sm:$0xff]
    %v92 = vld [vmem:[#allocation5 + $0x28] sm:$0xff]
    %v93 = vld [vmem:[#allocation5 + $0x30] sm:$0xff]
    %v94 = vld [vmem:[#allocation5 + $0x38] sm:$0xff]
    %v95 = vld [vmem:[#allocation5 + $0x40] sm:$0xff]
    %v96 = vld [vmem:[#allocation5 + $0x48] sm:$0xff]
    %v97 = vld [vmem:[#allocation5 + $0x50] sm:$0xff]
    %v98 = vld [vmem:[#allocation5 + $0x58] sm:$0xff]
    %v99 = vld [vmem:[#allocation5 + $0x60] sm:$0xff]
    %v100 = vld [vmem:[#allocation5 + $0x68] sm:$0xff]
    %v101 = vld [vmem:[#allocation5 + $0x70] sm:$0xff]
    %v102 = vld [vmem:[#allocation5 + $0x78] sm:$0xff]
    %v103 = vld [vmem:[#allocation5 + $0x80] sm:$0xff]
    %v104 = vld [vmem:[#allocation5 + $0x88] sm:$0xff]
    %v105 = vld [vmem:[#allocation5 + $0x90] sm:$0xff]
    %v106 = vld [vmem:[#allocation5 + $0x98] sm:$0xff]
    %v107 = vld [vmem:[#allocation5 + $0xa0] sm:$0xff]
    %v108 = vld [vmem:[#allocation5 + $0xa8] sm:$0xff]
    %v109 = vld [vmem:[#allocation5 + $0xb0] sm:$0xff]
    %v110 = vld [vmem:[#allocation5 + $0xb8] sm:$0xff]
    %v111 = vld [vmem:[#allocation5 + $0xc0] sm:$0xff]
    %v112 = vld [vmem:[#allocation5 + $0xc8] sm:$0xff]
    %v113 = vld [vmem:[#allocation5 + $0xd0] sm:$0xff]
    %v114 = vld [vmem:[#allocation5 + $0xd8] sm:$0xff]
    %v115 = vld [vmem:[#allocation5 + $0xe0] sm:$0xff]
    %v116 = vld [vmem:[#allocation5 + $0xe8] sm:$0xff]
    %v117 = vld [vmem:[#allocation5 + $0xf0] sm:$0xff]
    %v118 = vld [vmem:[#allocation5 + $0xf8] sm:$0xff]
    %v119 = vld [vmem:[#allocation5 + $0x100] sm:$0xff]
    %v120 = vld [vmem:[#allocation5 + $0x108] sm:$0xff]
    %v121 = vld [vmem:[#allocation5 + $0x110] sm:$0xff]
    %v122 = vld [vmem:[#allocation5 + $0x118] sm:$0xff]
    %v123 = vld [vmem:[#allocation5 + $0x120] sm:$0xff]
    %v124 = vld [vmem:[#allocation5 + $0x128] sm:$0xff]
    %v125 = vld [vmem:[#allocation5 + $0x130] sm:$0xff]
    %v126 = vld [vmem:[#allocation5 + $0x138] sm:$0xff]
    %v127 = vld [vmem:[#allocation5 + $0x140] sm:$0xff]
    %v128 = vld [vmem:[#allocation5 + $0x148] sm:$0xff]
    %v129 = vld [vmem:[#allocation5 + $0x150] sm:$0xff]
    %v130 = vld [vmem:[#allocation5 + $0x158] sm:$0xff]
    %v131 = vld [vmem:[#allocation5 + $0x160] sm:$0xff]
    %v132 = vld [vmem:[#allocation5 + $0x168] sm:$0xff]
    %v133 = vld [vmem:[#allocation5 + $0x170] sm:$0xff]
    %v134 = vld [vmem:[#allocation5 + $0x178] sm:$0xff]
    %v135 = vld [vmem:[#allocation5 + $0x180] sm:$0xff]
    %v136 = vld [vmem:[#allocation5 + $0x188] sm:$0xff]
    %v137 = vld [vmem:[#allocation5 + $0x190] sm:$0xff]
    %v138 = vld [vmem:[#allocation5 + $0x198] sm:$0xff]
    %v139 = vld [vmem:[#allocation5 + $0x1a0] sm:$0xff]
    %v140 = vld [vmem:[#allocation5 + $0x1a8] sm:$0xff]
    %v141 = vld [vmem:[#allocation5 + $0x1b0] sm:$0xff]
    %v142 = vld [vmem:[#allocation5 + $0x1b8] sm:$0xff]
    %v143 = vld [vmem:[#allocation5 + $0x1c0] sm:$0xff]
    %v144 = vld [vmem:[#allocation5 + $0x1c8] sm:$0xff]
    %v145 = vld [vmem:[#allocation5 + $0x1d0] sm:$0xff]
    %v146 = vld [vmem:[#allocation5 + $0x1d8] sm:$0xff]
    %v147 = vld [vmem:[#allocation5 + $0x1e0] sm:$0xff]
    %v148 = vld [vmem:[#allocation5 + $0x1e8] sm:$0xff]
    %v149 = vld [vmem:[#allocation5 + $0x1f0] sm:$0xff]
    %v150 = vld [vmem:[#allocation5 + $0x1f8] sm:$0xff]
    %v151 = vld [vmem:[#allocation5 + $0x200] sm:$0xff]
    %v152 = vld [vmem:[#allocation5 + $0x208] sm:$0xff]
    %v153 = vld [vmem:[#allocation5 + $0x210] sm:$0xff]
    %v154 = vld [vmem:[#allocation5 + $0x218] sm:$0xff]
    %v155 = vld [vmem:[#allocation5 + $0x220] sm:$0xff]
    %v156 = vld [vmem:[#allocation5 + $0x228] sm:$0xff]
    %v157 = vld [vmem:[#allocation5 + $0x230] sm:$0xff]
    %v158 = vld [vmem:[#allocation5 + $0x238] sm:$0xff]
    %v159 = vld [vmem:[#allocation5 + $0x240] sm:$0xff]
    %v160 = vld [vmem:[#allocation5 + $0x248] sm:$0xff]
    %v161 = vld [vmem:[#allocation5 + $0x250] sm:$0xff]
    %v162 = vld [vmem:[#allocation5 + $0x258] sm:$0xff]
    %v163 = vld [vmem:[#allocation5 + $0x260] sm:$0xff]
    %v164 = vld [vmem:[#allocation5 + $0x268] sm:$0xff]
    %v165 = vld [vmem:[#allocation5 + $0x270] sm:$0xff]
    %v166 = vld [vmem:[#allocation5 + $0x278] sm:$0xff]
    %v167 = vld [vmem:[#allocation5 + $0x280] sm:$0xff]
    %v168 = vld [vmem:[#allocation5 + $0x288] sm:$0xff]
    %v169 = vld [vmem:[#allocation5 + $0x290] sm:$0xff]
    %v170 = vld [vmem:[#allocation5 + $0x298] sm:$0xff]
    %v171 = vld [vmem:[#allocation5 + $0x2a0] sm:$0xff]
    %v172 = vld [vmem:[#allocation5 + $0x2a8] sm:$0xff]
    %v173 = vld [vmem:[#allocation5 + $0x2b0] sm:$0xff]
    %v174 = vld [vmem:[#allocation5 + $0x2b8] sm:$0xff]
    %v175 = vld [vmem:[#allocation5 + $0x2c0] sm:$0xff]
    %v176 = vld [vmem:[#allocation5 + $0x2c8] sm:$0xff]
    %v177 = vld [vmem:[#allocation5 + $0x2d0] sm:$0xff]
    %v178 = vld [vmem:[#allocation5 + $0x2d8] sm:$0xff]
    %v179 = vld [vmem:[#allocation5 + $0x2e0] sm:$0xff]
    %v180 = vld [vmem:[#allocation5 + $0x2e8] sm:$0xff]
    %v181 = vld [vmem:[#allocation5 + $0x2f0] sm:$0xff]
    %v182 = vld [vmem:[#allocation5 + $0x2f8] sm:$0xff]
    %v279 = vunpack.c.l.b16 %v87
    %v280 = vunpack.c.h.b16 %v87
    %v281 = vunpack.c.l.b16 %v88
    %v282 = vunpack.c.h.b16 %v88
    %v283 = vunpack.c.l.b16 %v89
    %v284 = vunpack.c.h.b16 %v89
    %v285 = vunpack.c.l.b16 %v90
    %v286 = vunpack.c.h.b16 %v90
    %v287 = vunpack.c.l.b16 %v91
    %v288 = vunpack.c.h.b16 %v91
    %v289 = vunpack.c.l.b16 %v92
    %v290 = vunpack.c.h.b16 %v92
    %v291 = vunpack.c.l.b16 %v93
    %v292 = vunpack.c.h.b16 %v93
    %v293 = vunpack.c.l.b16 %v94
    %v294 = vunpack.c.h.b16 %v94
    %v295 = vunpack.c.l.b16 %v95
    %v296 = vunpack.c.h.b16 %v95
    %v297 = vunpack.c.l.b16 %v96
    %v298 = vunpack.c.h.b16 %v96
    %v299 = vunpack.c.l.b16 %v97
    %v300 = vunpack.c.h.b16 %v97
    %v301 = vunpack.c.l.b16 %v98
    %v302 = vunpack.c.h.b16 %v98
    %v303 = vunpack.c.l.b16 %v99
    %v304 = vunpack.c.h.b16 %v99
    %v305 = vunpack.c.l.b16 %v100
    %v306 = vunpack.c.h.b16 %v100
    %v307 = vunpack.c.l.b16 %v101
    %v308 = vunpack.c.h.b16 %v101
    %v309 = vunpack.c.l.b16 %v102
    %v310 = vunpack.c.h.b16 %v102
    %v311 = vunpack.c.l.b16 %v103
    %v312 = vunpack.c.h.b16 %v103
    %v313 = vunpack.c.l.b16 %v104
    %v314 = vunpack.c.h.b16 %v104
    %v315 = vunpack.c.l.b16 %v105
    %v316 = vunpack.c.h.b16 %v105
    %v317 = vunpack.c.l.b16 %v106
    %v318 = vunpack.c.h.b16 %v106
    %v319 = vunpack.c.l.b16 %v107
    %v320 = vunpack.c.h.b16 %v107
    %v321 = vunpack.c.l.b16 %v108
    %v322 = vunpack.c.h.b16 %v108
    %v323 = vunpack.c.l.b16 %v109
    %v324 = vunpack.c.h.b16 %v109
    %v325 = vunpack.c.l.b16 %v110
    %v326 = vunpack.c.h.b16 %v110
    %v327 = vunpack.c.l.b16 %v111
    %v328 = vunpack.c.h.b16 %v111
    %v329 = vunpack.c.l.b16 %v112
    %v330 = vunpack.c.h.b16 %v112
    %v331 = vunpack.c.l.b16 %v113
    %v332 = vunpack.c.h.b16 %v113
    %v333 = vunpack.c.l.b16 %v114
    %v334 = vunpack.c.h.b16 %v114
    %v335 = vunpack.c.l.b16 %v115
    %v336 = vunpack.c.h.b16 %v115
    %v337 = vunpack.c.l.b16 %v116
    %v338 = vunpack.c.h.b16 %v116
    %v339 = vunpack.c.l.b16 %v117
    %v340 = vunpack.c.h.b16 %v117
    %v341 = vunpack.c.l.b16 %v118
    %v342 = vunpack.c.h.b16 %v118
    %v343 = vunpack.c.l.b16 %v119
    %v344 = vunpack.c.h.b16 %v119
    %v345 = vunpack.c.l.b16 %v120
    %v346 = vunpack.c.h.b16 %v120
    %v347 = vunpack.c.l.b16 %v121
    %v348 = vunpack.c.h.b16 %v121
    %v349 = vunpack.c.l.b16 %v122
    %v350 = vunpack.c.h.b16 %v122
    %v351 = vunpack.c.l.b16 %v123
    %v352 = vunpack.c.h.b16 %v123
    %v353 = vunpack.c.l.b16 %v124
    %v354 = vunpack.c.h.b16 %v124
    %v355 = vunpack.c.l.b16 %v125
    %v356 = vunpack.c.h.b16 %v125
    %v357 = vunpack.c.l.b16 %v126
    %v358 = vunpack.c.h.b16 %v126
    %v359 = vunpack.c.l.b16 %v127
    %v360 = vunpack.c.h.b16 %v127
    %v361 = vunpack.c.l.b16 %v128
    %v362 = vunpack.c.h.b16 %v128
    %v363 = vunpack.c.l.b16 %v129
    %v364 = vunpack.c.h.b16 %v129
    %v365 = vunpack.c.l.b16 %v130
    %v366 = vunpack.c.h.b16 %v130
    %v367 = vunpack.c.l.b16 %v131
    %v368 = vunpack.c.h.b16 %v131
    %v369 = vunpack.c.l.b16 %v132
    %v370 = vunpack.c.h.b16 %v132
    %v371 = vunpack.c.l.b16 %v133
    %v372 = vunpack.c.h.b16 %v133
    %v373 = vunpack.c.l.b16 %v134
    %v374 = vunpack.c.h.b16 %v134
    %v375 = vunpack.c.l.b16 %v135
    %v376 = vunpack.c.h.b16 %v135
    %v377 = vunpack.c.l.b16 %v136
    %v378 = vunpack.c.h.b16 %v136
    %v379 = vunpack.c.l.b16 %v137
    %v380 = vunpack.c.h.b16 %v137
    %v381 = vunpack.c.l.b16 %v138
    %v382 = vunpack.c.h.b16 %v138
    %v383 = vunpack.c.l.b16 %v139
    %v384 = vunpack.c.h.b16 %v139
    %v385 = vunpack.c.l.b16 %v140
    %v386 = vunpack.c.h.b16 %v140
    %v387 = vunpack.c.l.b16 %v141
    %v388 = vunpack.c.h.b16 %v141
    %v389 = vunpack.c.l.b16 %v142
    %v390 = vunpack.c.h.b16 %v142
    %v391 = vunpack.c.l.b16 %v143
    %v392 = vunpack.c.h.b16 %v143
    %v393 = vunpack.c.l.b16 %v144
    %v394 = vunpack.c.h.b16 %v144
    %v395 = vunpack.c.l.b16 %v145
    %v396 = vunpack.c.h.b16 %v145
    %v397 = vunpack.c.l.b16 %v146
    %v398 = vunpack.c.h.b16 %v146
    %v399 = vunpack.c.l.b16 %v147
    %v400 = vunpack.c.h.b16 %v147
    %v401 = vunpack.c.l.b16 %v148
    %v402 = vunpack.c.h.b16 %v148
    %v403 = vunpack.c.l.b16 %v149
    %v404 = vunpack.c.h.b16 %v149
    %v405 = vunpack.c.l.b16 %v150
    %v406 = vunpack.c.h.b16 %v150
    %v407 = vunpack.c.l.b16 %v151
    %v408 = vunpack.c.h.b16 %v151
    %v409 = vunpack.c.l.b16 %v152
    %v410 = vunpack.c.h.b16 %v152
    %v411 = vunpack.c.l.b16 %v153
    %v412 = vunpack.c.h.b16 %v153
    %v413 = vunpack.c.l.b16 %v154
    %v414 = vunpack.c.h.b16 %v154
    %v415 = vunpack.c.l.b16 %v155
    %v416 = vunpack.c.h.b16 %v155
    %v417 = vunpack.c.l.b16 %v156
    %v418 = vunpack.c.h.b16 %v156
    %v419 = vunpack.c.l.b16 %v157
    %v420 = vunpack.c.h.b16 %v157
    %v421 = vunpack.c.l.b16 %v158
    %v422 = vunpack.c.h.b16 %v158
    %v423 = vunpack.c.l.b16 %v159
    %v424 = vunpack.c.h.b16 %v159
    %v425 = vunpack.c.l.b16 %v160
    %v426 = vunpack.c.h.b16 %v160
    %v427 = vunpack.c.l.b16 %v161
    %v428 = vunpack.c.h.b16 %v161
    %v429 = vunpack.c.l.b16 %v162
    %v430 = vunpack.c.h.b16 %v162
    %v431 = vunpack.c.l.b16 %v163
    %v432 = vunpack.c.h.b16 %v163
    %v433 = vunpack.c.l.b16 %v164
    %v434 = vunpack.c.h.b16 %v164
    %v435 = vunpack.c.l.b16 %v165
    %v436 = vunpack.c.h.b16 %v165
    %v437 = vunpack.c.l.b16 %v166
    %v438 = vunpack.c.h.b16 %v166
    %v439 = vunpack.c.l.b16 %v167
    %v440 = vunpack.c.h.b16 %v167
    %v441 = vunpack.c.l.b16 %v168
    %v442 = vunpack.c.h.b16 %v168
    %v443 = vunpack.c.l.b16 %v169
    %v444 = vunpack.c.h.b16 %v169
    %v445 = vunpack.c.l.b16 %v170
    %v446 = vunpack.c.h.b16 %v170
    %v447 = vunpack.c.l.b16 %v171
    %v448 = vunpack.c.h.b16 %v171
    %v449 = vunpack.c.l.b16 %v172
    %v450 = vunpack.c.h.b16 %v172
    %v451 = vunpack.c.l.b16 %v173
    %v452 = vunpack.c.h.b16 %v173
    %v453 = vunpack.c.l.b16 %v174
    %v454 = vunpack.c.h.b16 %v174
    %v455 = vunpack.c.l.b16 %v175
    %v456 = vunpack.c.h.b16 %v175
    %v457 = vunpack.c.l.b16 %v176
    %v458 = vunpack.c.h.b16 %v176
    %v459 = vunpack.c.l.b16 %v177
    %v460 = vunpack.c.h.b16 %v177
    %v461 = vunpack.c.l.b16 %v178
    %v462 = vunpack.c.h.b16 %v178
    %v463 = vunpack.c.l.b16 %v179
    %v464 = vunpack.c.h.b16 %v179
    %v465 = vunpack.c.l.b16 %v180
    %v466 = vunpack.c.h.b16 %v180
    %v467 = vunpack.c.l.b16 %v181
    %v468 = vunpack.c.h.b16 %v181
    %v469 = vunpack.c.l.b16 %v182
    %v470 = vunpack.c.h.b16 %v182
    %v471 = vpack.c.b16 %v285, %v279
    %v472 = vpack.c.b16 %v286, %v280
    %v473 = vpack.c.b16 %v287, %v281
    %v474 = vpack.c.b16 %v288, %v282
    %v475 = vpack.c.b16 %v289, %v283
    %v476 = vpack.c.b16 %v290, %v284
    %v477 = vpack.c.b16 %v297, %v291
    %v478 = vpack.c.b16 %v298, %v292
    %v479 = vpack.c.b16 %v299, %v293
    %v480 = vpack.c.b16 %v300, %v294
    %v481 = vpack.c.b16 %v301, %v295
    %v482 = vpack.c.b16 %v302, %v296
    %v483 = vpack.c.b16 %v309, %v303
    %v484 = vpack.c.b16 %v310, %v304
    %v485 = vpack.c.b16 %v311, %v305
    %v486 = vpack.c.b16 %v312, %v306
    %v487 = vpack.c.b16 %v313, %v307
    %v488 = vpack.c.b16 %v314, %v308
    %v489 = vpack.c.b16 %v321, %v315
    %v490 = vpack.c.b16 %v322, %v316
    %v491 = vpack.c.b16 %v323, %v317
    %v492 = vpack.c.b16 %v324, %v318
    %v493 = vpack.c.b16 %v325, %v319
    %v494 = vpack.c.b16 %v326, %v320
    %v495 = vpack.c.b16 %v333, %v327
    %v496 = vpack.c.b16 %v334, %v328
    %v497 = vpack.c.b16 %v335, %v329
    %v498 = vpack.c.b16 %v336, %v330
    %v499 = vpack.c.b16 %v337, %v331
    %v500 = vpack.c.b16 %v338, %v332
    %v501 = vpack.c.b16 %v345, %v339
    %v502 = vpack.c.b16 %v346, %v340
    %v503 = vpack.c.b16 %v347, %v341
    %v504 = vpack.c.b16 %v348, %v342
    %v505 = vpack.c.b16 %v349, %v343
    %v506 = vpack.c.b16 %v350, %v344
    %v507 = vpack.c.b16 %v357, %v351
    %v508 = vpack.c.b16 %v358, %v352
    %v509 = vpack.c.b16 %v359, %v353
    %v510 = vpack.c.b16 %v360, %v354
    %v511 = vpack.c.b16 %v361, %v355
    %v512 = vpack.c.b16 %v362, %v356
    %v513 = vpack.c.b16 %v369, %v363
    %v514 = vpack.c.b16 %v370, %v364
    %v515 = vpack.c.b16 %v371, %v365
    %v516 = vpack.c.b16 %v372, %v366
    %v517 = vpack.c.b16 %v373, %v367
    %v518 = vpack.c.b16 %v374, %v368
    %v519 = vpack.c.b16 %v381, %v375
    %v520 = vpack.c.b16 %v382, %v376
    %v521 = vpack.c.b16 %v383, %v377
    %v522 = vpack.c.b16 %v384, %v378
    %v523 = vpack.c.b16 %v385, %v379
    %v524 = vpack.c.b16 %v386, %v380
    %v525 = vpack.c.b16 %v393, %v387
    %v526 = vpack.c.b16 %v394, %v388
    %v527 = vpack.c.b16 %v395, %v389
    %v528 = vpack.c.b16 %v396, %v390
    %v529 = vpack.c.b16 %v397, %v391
    %v530 = vpack.c.b16 %v398, %v392
    %v531 = vpack.c.b16 %v405, %v399
    %v532 = vpack.c.b16 %v406, %v400
    %v533 = vpack.c.b16 %v407, %v401
    %v534 = vpack.c.b16 %v408, %v402
    %v535 = vpack.c.b16 %v409, %v403
    %v536 = vpack.c.b16 %v410, %v404
    %v537 = vpack.c.b16 %v417, %v411
    %v538 = vpack.c.b16 %v418, %v412
    %v539 = vpack.c.b16 %v419, %v413
    %v540 = vpack.c.b16 %v420, %v414
    %v541 = vpack.c.b16 %v421, %v415
    %v542 = vpack.c.b16 %v422, %v416
    %v543 = vpack.c.b16 %v429, %v423
    %v544 = vpack.c.b16 %v430, %v424
    %v545 = vpack.c.b16 %v431, %v425
    %v546 = vpack.c.b16 %v432, %v426
    %v547 = vpack.c.b16 %v433, %v427
    %v548 = vpack.c.b16 %v434, %v428
    %v549 = vpack.c.b16 %v441, %v435
    %v550 = vpack.c.b16 %v442, %v436
    %v551 = vpack.c.b16 %v443, %v437
    %v552 = vpack.c.b16 %v444, %v438
    %v553 = vpack.c.b16 %v445, %v439
    %v554 = vpack.c.b16 %v446, %v440
    %v555 = vpack.c.b16 %v453, %v447
    %v556 = vpack.c.b16 %v454, %v448
    %v557 = vpack.c.b16 %v455, %v449
    %v558 = vpack.c.b16 %v456, %v450
    %v559 = vpack.c.b16 %v457, %v451
    %v560 = vpack.c.b16 %v458, %v452
    %v561 = vpack.c.b16 %v465, %v459
    %v562 = vpack.c.b16 %v466, %v460
    %v563 = vpack.c.b16 %v467, %v461
    %v564 = vpack.c.b16 %v468, %v462
    %v565 = vpack.c.b16 %v469, %v463
    %v566 = vpack.c.b16 %v470, %v464
    %663 = vmatprep.subr.bf16.mxu0 %v514
    %664 = vmatpush1.bf16.msra.mxu0 %v513
    %665 = vmatprep.subr.bf16.mxu0 %v508
    %666 = vmatpush1.bf16.msra.mxu0 %v507
    %667 = vmatprep.subr.bf16.mxu0 %v502
    %668 = vmatpush1.bf16.msra.mxu0 %v501
    %669 = vmatprep.subr.bf16.mxu0 %v496
    %670 = vmatpush1.bf16.msra.mxu0 %v495
    %671 = vmatprep.subr.bf16.mxu0 %v490
    %672 = vmatpush1.bf16.msra.mxu0 %v489
    %673 = vmatprep.subr.bf16.mxu0 %v484
    %674 = vmatpush1.bf16.msra.mxu0 %v483
    %675 = vmatprep.subr.bf16.mxu0 %v478
    %676 = vmatpush1.bf16.msra.mxu0 %v477
    %677 = vmatprep.subr.bf16.mxu0 %v472
    %678 = vmatpush1.bf16.msra.mxu0 %v471
    %679 = vmatprep.subr.bf16.mxu0 %v562
    %680 = vmatpush2.bf16.msra.mxu0 %v561
    %681 = vmatprep.subr.bf16.mxu0 %v556
    %682 = vmatpush2.bf16.msra.mxu0 %v555
    %683 = vmatprep.subr.bf16.mxu0 %v550
    %684 = vmatpush2.bf16.msra.mxu0 %v549
    %685 = vmatprep.subr.bf16.mxu0 %v544
    %686 = vmatpush2.bf16.msra.mxu0 %v543
    %687 = vmatprep.subr.bf16.mxu0 %v538
    %688 = vmatpush2.bf16.msra.mxu0 %v537
    %689 = vmatprep.subr.bf16.mxu0 %v532
    %690 = vmatpush2.bf16.msra.mxu0 %v531
    %691 = vmatprep.subr.bf16.mxu0 %v526
    %692 = vmatpush2.bf16.msra.mxu0 %v525
    %693 = vmatprep.subr.bf16.mxu0 %v520
    %694 = vmatpush2.bf16.msra.mxu0 %v519
    %695 = vmatprep.mubr.bf16.mxu0 %v86
    %696 = vmatmul.mubr.bf16.gmra.mxu0 %v85
    %v697 = vpop.f32.mrf.mxu0
    %v698 = vadd.f32 0.0, %v697
    %v699 = vpop.f32.mrf.mxu0
    %v700 = vadd.f32 0.0, %v699
    %v701 = vpop.f32.mrf.mxu0
    %v702 = vpop.f32.mrf.mxu0
    %703 = vdwg.mxu0
    %704 = vmatprep.subr.bf16.mxu0 %v516
    %705 = vmatpush1.bf16.msra.mxu0 %v515
    %706 = vmatprep.subr.bf16.mxu0 %v510
    %707 = vmatpush1.bf16.msra.mxu0 %v509
    %708 = vmatprep.subr.bf16.mxu0 %v504
    %709 = vmatpush1.bf16.msra.mxu0 %v503
    %710 = vmatprep.subr.bf16.mxu0 %v498
    %711 = vmatpush1.bf16.msra.mxu0 %v497
    %712 = vmatprep.subr.bf16.mxu0 %v492
    %713 = vmatpush1.bf16.msra.mxu0 %v491
    %714 = vmatprep.subr.bf16.mxu0 %v486
    %715 = vmatpush1.bf16.msra.mxu0 %v485
    %716 = vmatprep.subr.bf16.mxu0 %v480
    %717 = vmatpush1.bf16.msra.mxu0 %v479
    %718 = vmatprep.subr.bf16.mxu0 %v474
    %719 = vmatpush1.bf16.msra.mxu0 %v473
    %720 = vmatprep.subr.bf16.mxu0 %v564
    %721 = vmatpush2.bf16.msra.mxu0 %v563
    %722 = vmatprep.subr.bf16.mxu0 %v558
    %723 = vmatpush2.bf16.msra.mxu0 %v557
    %724 = vmatprep.subr.bf16.mxu0 %v552
    %725 = vmatpush2.bf16.msra.mxu0 %v551
    %726 = vmatprep.subr.bf16.mxu0 %v546
    %727 = vmatpush2.bf16.msra.mxu0 %v545
    %728 = vmatprep.subr.bf16.mxu0 %v540
    %729 = vmatpush2.bf16.msra.mxu0 %v539
    %730 = vmatprep.subr.bf16.mxu0 %v534
    %731 = vmatpush2.bf16.msra.mxu0 %v533
    %732 = vmatprep.subr.bf16.mxu0 %v528
    %733 = vmatpush2.bf16.msra.mxu0 %v527
    %734 = vmatprep.subr.bf16.mxu0 %v522
    %735 = vmatpush2.bf16.msra.mxu0 %v521
    %736 = vmatprep.mubr.bf16.mxu0 %v86
    %737 = vmatmul.mubr.bf16.gmra.mxu0 %v85
    %v738 = vpop.f32.mrf.mxu0
    %v739 = vadd.f32 0.0, %v738
    %v740 = vpop.f32.mrf.mxu0
    %v741 = vadd.f32 0.0, %v740
    %v742 = vpop.f32.mrf.mxu0
    %v743 = vpop.f32.mrf.mxu0
    %744 = vdwg.mxu0
    %745 = vmatprep.subr.bf16.mxu0 %v518
    %746 = vmatpush1.bf16.msra.mxu0 %v517
    %747 = vmatprep.subr.bf16.mxu0 %v512
    %748 = vmatpush1.bf16.msra.mxu0 %v511
    %749 = vmatprep.subr.bf16.mxu0 %v506
    %750 = vmatpush1.bf16.msra.mxu0 %v505
    %751 = vmatprep.subr.bf16.mxu0 %v500
    %752 = vmatpush1.bf16.msra.mxu0 %v499
    %753 = vmatprep.subr.bf16.mxu0 %v494
    %754 = vmatpush1.bf16.msra.mxu0 %v493
    %755 = vmatprep.subr.bf16.mxu0 %v488
    %756 = vmatpush1.bf16.msra.mxu0 %v487
    %757 = vmatprep.subr.bf16.mxu0 %v482
    %758 = vmatpush1.bf16.msra.mxu0 %v481
    %759 = vmatprep.subr.bf16.mxu0 %v476
    %760 = vmatpush1.bf16.msra.mxu0 %v475
    %761 = vmatprep.subr.bf16.mxu0 %v566
    %762 = vmatpush2.bf16.msra.mxu0 %v565
    %763 = vmatprep.subr.bf16.mxu0 %v560
    %764 = vmatpush2.bf16.msra.mxu0 %v559
    %765 = vmatprep.subr.bf16.mxu0 %v554
    %766 = vmatpush2.bf16.msra.mxu0 %v553
    %767 = vmatprep.subr.bf16.mxu0 %v548
    %768 = vmatpush2.bf16.msra.mxu0 %v547
    %769 = vmatprep.subr.bf16.mxu0 %v542
    %770 = vmatpush2.bf16.msra.mxu0 %v541
    %771 = vmatprep.subr.bf16.mxu0 %v536
    %772 = vmatpush2.bf16.msra.mxu0 %v535
    %773 = vmatprep.subr.bf16.mxu0 %v530
    %774 = vmatpush2.bf16.msra.mxu0 %v529
    %775 = vmatprep.subr.bf16.mxu0 %v524
    %776 = vmatpush2.bf16.msra.mxu0 %v523
    %777 = vmatprep.mubr.bf16.mxu0 %v86
    %778 = vmatmul.mubr.bf16.gmra.mxu0 %v85
    %v779 = vpop.f32.mrf.mxu0
    %v780 = vadd.f32 0.0, %v779
    %v781 = vpop.f32.mrf.mxu0
    %v782 = vadd.f32 0.0, %v781
    %v783 = vpop.f32.mrf.mxu0
    %v784 = vpop.f32.mrf.mxu0
    %785 = vdwg.mxu0
    %v786 = vld [vmem:[%s3] sm:$0x3]
    %v788 = vlaneseq
    %v789 = vshrl.u32 %v788, 7
    %v790 = vsub.s32 0, %v789
    %v791 = vrot.slane %v786, %v790
    %v792 = vlaneseq
    %v793 = vshrl.u32 %v792, 7
    %v794 = vsub.s32 1, %v793
    %v795 = vrot.slane %v786, %v794
    %v798 = vadd.f32 %v698, %v791
    %v799 = vadd.f32 %v700, %v795
    %v800 = vld [vmem:[%s4] sm:$0x3]
    %v802 = vlaneseq
    %v803 = vshrl.u32 %v802, 7
    %v804 = vsub.s32 0, %v803
    %v805 = vrot.slane %v800, %v804
    %v806 = vlaneseq
    %v807 = vshrl.u32 %v806, 7
    %v808 = vsub.s32 1, %v807
    %v809 = vrot.slane %v800, %v808
    %v812 = vadd.f32 %v780, %v805
    %v813 = vadd.f32 %v782, %v809
    %v814 = vlaneseq
    %v815 = vand.u32 %v814, 127
    %v816 = vadd.s32 %v815, 128
    %vm817 = vcmp.lt.s32.totalorder %v815, 200
    %vm818 = vcmp.lt.s32.totalorder %v816, 200
    %v819 = vsel %vm817, 1, 0
    %v820 = vsel %vm818, 1, 0
    %vm821 = vcmp.eq.s32.totalorder %v819, 1
    %vm822 = vcmp.eq.s32.totalorder %v820, 1
    %v823 = vsel %vm821, %v798, -1e+30
    %v824 = vsel %vm822, %v799, -1e+30
    %v825 = vmax.f32 %v823, %v824
    %826 = vmax.xlane.f32.xlu0 %v825
    %v827 = vpop.xlane.xlu0 %826
    %v828 = vsub.f32 %v823, %v827
    %v829 = vsub.f32 %v824, %v827
    %v830 = vmul.f32 %v828, 1.442695
    %v831 = vpow.pop %v830
    %v832 = vmul.f32 %v829, 1.442695
    %v833 = vpow.pop %v832
    %v834 = vadd.f32 %v831, %v833
    %835 = vadd.xlane.f32.xlu0 %v834
    %v836 = vpop.xlane.xlu0 %835
    %v837 = vrcp.pop %v836
    %v838 = vmul.f32 %v831, %v837
    %v839 = vmul.f32 %v833, %v837
    %840 = vst [vmem:[#allocation11] sm:$0xff] %v838
    %841 = vst [vmem:[#allocation11 + $0x8] sm:$0xff] %v839
    %v842 = vpack.c.bf16 %v838, %v838
    %v843 = vpack.c.bf16 %v839, %v839
    %v844 = vld [vmem:[#allocation7] sm:$0xff]
    %v845 = vld [vmem:[#allocation7 + $0x8] sm:$0xff]
    %v846 = vld [vmem:[#allocation7 + $0x10] sm:$0xff]
    %v847 = vld [vmem:[#allocation7 + $0x18] sm:$0xff]
    %v848 = vld [vmem:[#allocation7 + $0x20] sm:$0xff]
    %v849 = vld [vmem:[#allocation7 + $0x28] sm:$0xff]
    %v850 = vld [vmem:[#allocation7 + $0x30] sm:$0xff]
    %v851 = vld [vmem:[#allocation7 + $0x38] sm:$0xff]
    %v852 = vld [vmem:[#allocation7 + $0x40] sm:$0xff]
    %v853 = vld [vmem:[#allocation7 + $0x48] sm:$0xff]
    %v854 = vld [vmem:[#allocation7 + $0x50] sm:$0xff]
    %v855 = vld [vmem:[#allocation7 + $0x58] sm:$0xff]
    %v856 = vld [vmem:[#allocation7 + $0x60] sm:$0xff]
    %v857 = vld [vmem:[#allocation7 + $0x68] sm:$0xff]
    %v858 = vld [vmem:[#allocation7 + $0x70] sm:$0xff]
    %v859 = vld [vmem:[#allocation7 + $0x78] sm:$0xff]
    %v860 = vld [vmem:[#allocation7 + $0x80] sm:$0xff]
    %v861 = vld [vmem:[#allocation7 + $0x88] sm:$0xff]
    %v862 = vld [vmem:[#allocation7 + $0x90] sm:$0xff]
    %v863 = vld [vmem:[#allocation7 + $0x98] sm:$0xff]
    %v864 = vld [vmem:[#allocation7 + $0xa0] sm:$0xff]
    %v865 = vld [vmem:[#allocation7 + $0xa8] sm:$0xff]
    %v866 = vld [vmem:[#allocation7 + $0xb0] sm:$0xff]
    %v867 = vld [vmem:[#allocation7 + $0xb8] sm:$0xff]
    %v868 = vld [vmem:[#allocation7 + $0xc0] sm:$0xff]
    %v869 = vld [vmem:[#allocation7 + $0xc8] sm:$0xff]
    %v870 = vld [vmem:[#allocation7 + $0xd0] sm:$0xff]
    %v871 = vld [vmem:[#allocation7 + $0xd8] sm:$0xff]
    %v872 = vld [vmem:[#allocation7 + $0xe0] sm:$0xff]
    %v873 = vld [vmem:[#allocation7 + $0xe8] sm:$0xff]
    %v874 = vld [vmem:[#allocation7 + $0xf0] sm:$0xff]
    %v875 = vld [vmem:[#allocation7 + $0xf8] sm:$0xff]
    %v908 = vunpack.c.l.b16 %v844
    %v909 = vunpack.c.h.b16 %v844
    %v910 = vunpack.c.l.b16 %v845
    %v911 = vunpack.c.h.b16 %v845
    %v912 = vunpack.c.l.b16 %v846
    %v913 = vunpack.c.h.b16 %v846
    %v914 = vunpack.c.l.b16 %v847
    %v915 = vunpack.c.h.b16 %v847
    %v916 = vunpack.c.l.b16 %v848
    %v917 = vunpack.c.h.b16 %v848
    %v918 = vunpack.c.l.b16 %v849
    %v919 = vunpack.c.h.b16 %v849
    %v920 = vunpack.c.l.b16 %v850
    %v921 = vunpack.c.h.b16 %v850
    %v922 = vunpack.c.l.b16 %v851
    %v923 = vunpack.c.h.b16 %v851
    %v924 = vunpack.c.l.b16 %v852
    %v925 = vunpack.c.h.b16 %v852
    %v926 = vunpack.c.l.b16 %v853
    %v927 = vunpack.c.h.b16 %v853
    %v928 = vunpack.c.l.b16 %v854
    %v929 = vunpack.c.h.b16 %v854
    %v930 = vunpack.c.l.b16 %v855
    %v931 = vunpack.c.h.b16 %v855
    %v932 = vunpack.c.l.b16 %v856
    %v933 = vunpack.c.h.b16 %v856
    %v934 = vunpack.c.l.b16 %v857
    %v935 = vunpack.c.h.b16 %v857
    %v936 = vunpack.c.l.b16 %v858
    %v937 = vunpack.c.h.b16 %v858
    %v938 = vunpack.c.l.b16 %v859
    %v939 = vunpack.c.h.b16 %v859
    %v940 = vunpack.c.l.b16 %v860
    %v941 = vunpack.c.h.b16 %v860
    %v942 = vunpack.c.l.b16 %v861
    %v943 = vunpack.c.h.b16 %v861
    %v944 = vunpack.c.l.b16 %v862
    %v945 = vunpack.c.h.b16 %v862
    %v946 = vunpack.c.l.b16 %v863
    %v947 = vunpack.c.h.b16 %v863
    %v948 = vunpack.c.l.b16 %v864
    %v949 = vunpack.c.h.b16 %v864
    %v950 = vunpack.c.l.b16 %v865
    %v951 = vunpack.c.h.b16 %v865
    %v952 = vunpack.c.l.b16 %v866
    %v953 = vunpack.c.h.b16 %v866
    %v954 = vunpack.c.l.b16 %v867
    %v955 = vunpack.c.h.b16 %v867
    %v956 = vunpack.c.l.b16 %v868
    %v957 = vunpack.c.h.b16 %v868
    %v958 = vunpack.c.l.b16 %v869
    %v959 = vunpack.c.h.b16 %v869
    %v960 = vunpack.c.l.b16 %v870
    %v961 = vunpack.c.h.b16 %v870
    %v962 = vunpack.c.l.b16 %v871
    %v963 = vunpack.c.h.b16 %v871
    %v964 = vunpack.c.l.b16 %v872
    %v965 = vunpack.c.h.b16 %v872
    %v966 = vunpack.c.l.b16 %v873
    %v967 = vunpack.c.h.b16 %v873
    %v968 = vunpack.c.l.b16 %v874
    %v969 = vunpack.c.h.b16 %v874
    %v970 = vunpack.c.l.b16 %v875
    %v971 = vunpack.c.h.b16 %v875
    %v972 = vpack.c.b16 %v910, %v908
    %v973 = vpack.c.b16 %v911, %v909
    %v974 = vpack.c.b16 %v914, %v912
    %v975 = vpack.c.b16 %v915, %v913
    %v976 = vpack.c.b16 %v918, %v916
    %v977 = vpack.c.b16 %v919, %v917
    %v978 = vpack.c.b16 %v922, %v920
    %v979 = vpack.c.b16 %v923, %v921
    %v980 = vpack.c.b16 %v926, %v924
    %v981 = vpack.c.b16 %v927, %v925
    %v982 = vpack.c.b16 %v930, %v928
    %v983 = vpack.c.b16 %v931, %v929
    %v984 = vpack.c.b16 %v934, %v932
    %v985 = vpack.c.b16 %v935, %v933
    %v986 = vpack.c.b16 %v938, %v936
    %v987 = vpack.c.b16 %v939, %v937
    %v988 = vpack.c.b16 %v942, %v940
    %v989 = vpack.c.b16 %v943, %v941
    %v990 = vpack.c.b16 %v946, %v944
    %v991 = vpack.c.b16 %v947, %v945
    %v992 = vpack.c.b16 %v950, %v948
    %v993 = vpack.c.b16 %v951, %v949
    %v994 = vpack.c.b16 %v954, %v952
    %v995 = vpack.c.b16 %v955, %v953
    %v996 = vpack.c.b16 %v958, %v956
    %v997 = vpack.c.b16 %v959, %v957
    %v998 = vpack.c.b16 %v962, %v960
    %v999 = vpack.c.b16 %v963, %v961
    %v1000 = vpack.c.b16 %v966, %v964
    %v1001 = vpack.c.b16 %v967, %v965
    %v1002 = vpack.c.b16 %v970, %v968
    %v1003 = vpack.c.b16 %v971, %v969
    %1036 = vmatprep.subr.bf16.mxu0 %v987
    %1037 = vmatpush1.bf16.msra.mxu0 %v986
    %1038 = vmatprep.subr.bf16.mxu0 %v985
    %1039 = vmatpush1.bf16.msra.mxu0 %v984
    %1040 = vmatprep.subr.bf16.mxu0 %v983
    %1041 = vmatpush1.bf16.msra.mxu0 %v982
    %1042 = vmatprep.subr.bf16.mxu0 %v981
    %1043 = vmatpush1.bf16.msra.mxu0 %v980
    %1044 = vmatprep.subr.bf16.mxu0 %v979
    %1045 = vmatpush1.bf16.msra.mxu0 %v978
    %1046 = vmatprep.subr.bf16.mxu0 %v977
    %1047 = vmatpush1.bf16.msra.mxu0 %v976
    %1048 = vmatprep.subr.bf16.mxu0 %v975
    %1049 = vmatpush1.bf16.msra.mxu0 %v974
    %1050 = vmatprep.subr.bf16.mxu0 %v973
    %1051 = vmatpush1.bf16.msra.mxu0 %v972
    %1052 = vmatprep.subr.bf16.mxu0 %v1003
    %1053 = vmatpush2.bf16.msra.mxu0 %v1002
    %1054 = vmatprep.subr.bf16.mxu0 %v1001
    %1055 = vmatpush2.bf16.msra.mxu0 %v1000
    %1056 = vmatprep.subr.bf16.mxu0 %v999
    %1057 = vmatpush2.bf16.msra.mxu0 %v998
    %1058 = vmatprep.subr.bf16.mxu0 %v997
    %1059 = vmatpush2.bf16.msra.mxu0 %v996
    %1060 = vmatprep.subr.bf16.mxu0 %v995
    %1061 = vmatpush2.bf16.msra.mxu0 %v994
    %1062 = vmatprep.subr.bf16.mxu0 %v993
    %1063 = vmatpush2.bf16.msra.mxu0 %v992
    %1064 = vmatprep.subr.bf16.mxu0 %v991
    %1065 = vmatpush2.bf16.msra.mxu0 %v990
    %1066 = vmatprep.subr.bf16.mxu0 %v989
    %1067 = vmatpush2.bf16.msra.mxu0 %v988
    %1068 = vmatprep.mubr.bf16.mxu0 %v843
    %1069 = vmatmul.mubr.bf16.gmra.mxu0 %v842
    %v1070 = vpop.f32.mrf.mxu0
    %v1071 = vadd.f32 0.0, %v1070
    %v1072 = vpop.f32.mrf.mxu0
    %v1073 = vadd.f32 0.0, %v1072
    %v1074 = vpop.f32.mrf.mxu0
    %v1075 = vpop.f32.mrf.mxu0
    %1076 = vdwg.mxu0
    %v1077 = vtanh.pop %v812
    %v1078 = vtanh.pop %v813
    %v1079 = vmul.f32 %v83, %v83
    %v1080 = vmul.f32 %v84, %v84
    %v1081 = vadd.f32 %v1079, %v1080
    %1082 = vadd.xlane.f32.xlu0 %v1081
    %v1083 = vpop.xlane.xlu0 %1082
    %v1084 = vld [vmem:[%s5] sm:$0x3]
    %v1086 = vlaneseq
    %v1087 = vshrl.u32 %v1086, 7
    %v1088 = vsub.s32 0, %v1087
    %v1089 = vrot.slane %v1084, %v1088
    %v1090 = vlaneseq
    %v1091 = vshrl.u32 %v1090, 7
    %v1092 = vsub.s32 1, %v1091
    %v1093 = vrot.slane %v1084, %v1092
    %v1096 = vadd.f32 %v1083, %v1089
    %v1097 = vadd.f32 %v1083, %v1093
    %v1098 = vmul.f32 %v739, 2.0
    %v1099 = vmul.f32 %v741, 2.0
    %v1100 = vsub.f32 %v1096, %v1098
    %v1101 = vsub.f32 %v1097, %v1099
    %v1102 = vsel %vm821, %v1100, inf
    %v1103 = vsel %vm822, %v1101, inf
    %v1104 = vmin.f32 %v1102, %v1103
    %1105 = vmin.xlane.f32.xlu0 %v1104
    %v1106 = vpop.xlane.xlu0 %1105
    %v1107 = vmax.f32 %v1106, 1e-12
    %v1108 = vrsqrt.pop %v1107
    %v1109 = vmul.f32 %v1108, 10.0
    %v1110 = vmul.f32 %v1077, %v1071
    %v1111 = vmul.f32 %v1078, %v1073
    %v1112 = vadd.f32 %v83, %v1110
    %v1113 = vadd.f32 %v84, %v1111
    %v1114 = vmul.f32 %v1109, %v1112
    %v1115 = vmul.f32 %v1109, %v1113
    %v1116 = vmul.f32 %v1114, %v1114
    %v1117 = vmul.f32 %v1115, %v1115
    %v1118 = vadd.f32 %v1116, %v1117
    %1119 = vadd.xlane.f32.xlu0 %v1118
    %v1120 = vpop.xlane.xlu0 %1119
    %v1121 = vrsqrt.pop %v1120
    %v1122 = vmul.f32 %v1120, %v1121
    %vm1123 = vcmp.eq.f32.partialorder %v1120, inf
    %v1124 = vsel %vm1123, %v1120, %v1122
    %vm1125 = vcmp.eq.f32.partialorder %v1120, 0.0
    %v1126 = vand.u32 %v1120, 2147483648
    %v1127 = vsel %vm1125, %v1126, %v1124
    %v1128 = vadd.f32 %v1127, 1.0
    %v1129 = vrcp.pop %v1128
    %v1130 = vmul.f32 16.0, %v1129
    %v1131 = vmul.f32 %v1114, %v1130
    %v1132 = vmul.f32 %v1115, %v1130
    %v1133 = vpack.c.bf16 %v1131, %v1131
    %v1134 = vpack.c.bf16 %v1132, %v1132
    %v1135 = vld [vmem:[#allocation8] sm:$0xff]
    %v1136 = vld [vmem:[#allocation8 + $0x8] sm:$0xff]
    %v1137 = vld [vmem:[#allocation8 + $0x10] sm:$0xff]
    %v1138 = vld [vmem:[#allocation8 + $0x18] sm:$0xff]
    %v1139 = vld [vmem:[#allocation8 + $0x20] sm:$0xff]
    %v1140 = vld [vmem:[#allocation8 + $0x28] sm:$0xff]
    %v1141 = vld [vmem:[#allocation8 + $0x30] sm:$0xff]
    %v1142 = vld [vmem:[#allocation8 + $0x38] sm:$0xff]
    %v1143 = vld [vmem:[#allocation8 + $0x40] sm:$0xff]
    %v1144 = vld [vmem:[#allocation8 + $0x48] sm:$0xff]
    %v1145 = vld [vmem:[#allocation8 + $0x50] sm:$0xff]
    %v1146 = vld [vmem:[#allocation8 + $0x58] sm:$0xff]
    %v1147 = vld [vmem:[#allocation8 + $0x60] sm:$0xff]
    %v1148 = vld [vmem:[#allocation8 + $0x68] sm:$0xff]
    %v1149 = vld [vmem:[#allocation8 + $0x70] sm:$0xff]
    %v1150 = vld [vmem:[#allocation8 + $0x78] sm:$0xff]
    %v1151 = vld [vmem:[#allocation8 + $0x80] sm:$0xff]
    %v1152 = vld [vmem:[#allocation8 + $0x88] sm:$0xff]
    %v1153 = vld [vmem:[#allocation8 + $0x90] sm:$0xff]
    %v1154 = vld [vmem:[#allocation8 + $0x98] sm:$0xff]
    %v1155 = vld [vmem:[#allocation8 + $0xa0] sm:$0xff]
    %v1156 = vld [vmem:[#allocation8 + $0xa8] sm:$0xff]
    %v1157 = vld [vmem:[#allocation8 + $0xb0] sm:$0xff]
    %v1158 = vld [vmem:[#allocation8 + $0xb8] sm:$0xff]
    %v1159 = vld [vmem:[#allocation8 + $0xc0] sm:$0xff]
    %v1160 = vld [vmem:[#allocation8 + $0xc8] sm:$0xff]
    %v1161 = vld [vmem:[#allocation8 + $0xd0] sm:$0xff]
    %v1162 = vld [vmem:[#allocation8 + $0xd8] sm:$0xff]
    %v1163 = vld [vmem:[#allocation8 + $0xe0] sm:$0xff]
    %v1164 = vld [vmem:[#allocation8 + $0xe8] sm:$0xff]
    %v1165 = vld [vmem:[#allocation8 + $0xf0] sm:$0xff]
    %v1166 = vld [vmem:[#allocation8 + $0xf8] sm:$0xff]
    %v1199 = vunpack.c.l.b16 %v1135
    %v1200 = vunpack.c.h.b16 %v1135
    %v1201 = vunpack.c.l.b16 %v1136
    %v1202 = vunpack.c.h.b16 %v1136
    %v1203 = vunpack.c.l.b16 %v1137
    %v1204 = vunpack.c.h.b16 %v1137
    %v1205 = vunpack.c.l.b16 %v1138
    %v1206 = vunpack.c.h.b16 %v1138
    %v1207 = vunpack.c.l.b16 %v1139
    %v1208 = vunpack.c.h.b16 %v1139
    %v1209 = vunpack.c.l.b16 %v1140
    %v1210 = vunpack.c.h.b16 %v1140
    %v1211 = vunpack.c.l.b16 %v1141
    %v1212 = vunpack.c.h.b16 %v1141
    %v1213 = vunpack.c.l.b16 %v1142
    %v1214 = vunpack.c.h.b16 %v1142
    %v1215 = vunpack.c.l.b16 %v1143
    %v1216 = vunpack.c.h.b16 %v1143
    %v1217 = vunpack.c.l.b16 %v1144
    %v1218 = vunpack.c.h.b16 %v1144
    %v1219 = vunpack.c.l.b16 %v1145
    %v1220 = vunpack.c.h.b16 %v1145
    %v1221 = vunpack.c.l.b16 %v1146
    %v1222 = vunpack.c.h.b16 %v1146
    %v1223 = vunpack.c.l.b16 %v1147
    %v1224 = vunpack.c.h.b16 %v1147
    %v1225 = vunpack.c.l.b16 %v1148
    %v1226 = vunpack.c.h.b16 %v1148
    %v1227 = vunpack.c.l.b16 %v1149
    %v1228 = vunpack.c.h.b16 %v1149
    %v1229 = vunpack.c.l.b16 %v1150
    %v1230 = vunpack.c.h.b16 %v1150
    %v1231 = vunpack.c.l.b16 %v1151
    %v1232 = vunpack.c.h.b16 %v1151
    %v1233 = vunpack.c.l.b16 %v1152
    %v1234 = vunpack.c.h.b16 %v1152
    %v1235 = vunpack.c.l.b16 %v1153
    %v1236 = vunpack.c.h.b16 %v1153
    %v1237 = vunpack.c.l.b16 %v1154
    %v1238 = vunpack.c.h.b16 %v1154
    %v1239 = vunpack.c.l.b16 %v1155
    %v1240 = vunpack.c.h.b16 %v1155
    %v1241 = vunpack.c.l.b16 %v1156
    %v1242 = vunpack.c.h.b16 %v1156
    %v1243 = vunpack.c.l.b16 %v1157
    %v1244 = vunpack.c.h.b16 %v1157
    %v1245 = vunpack.c.l.b16 %v1158
    %v1246 = vunpack.c.h.b16 %v1158
    %v1247 = vunpack.c.l.b16 %v1159
    %v1248 = vunpack.c.h.b16 %v1159
    %v1249 = vunpack.c.l.b16 %v1160
    %v1250 = vunpack.c.h.b16 %v1160
    %v1251 = vunpack.c.l.b16 %v1161
    %v1252 = vunpack.c.h.b16 %v1161
    %v1253 = vunpack.c.l.b16 %v1162
    %v1254 = vunpack.c.h.b16 %v1162
    %v1255 = vunpack.c.l.b16 %v1163
    %v1256 = vunpack.c.h.b16 %v1163
    %v1257 = vunpack.c.l.b16 %v1164
    %v1258 = vunpack.c.h.b16 %v1164
    %v1259 = vunpack.c.l.b16 %v1165
    %v1260 = vunpack.c.h.b16 %v1165
    %v1261 = vunpack.c.l.b16 %v1166
    %v1262 = vunpack.c.h.b16 %v1166
    %v1263 = vpack.c.b16 %v1201, %v1199
    %v1264 = vpack.c.b16 %v1202, %v1200
    %v1265 = vpack.c.b16 %v1205, %v1203
    %v1266 = vpack.c.b16 %v1206, %v1204
    %v1267 = vpack.c.b16 %v1209, %v1207
    %v1268 = vpack.c.b16 %v1210, %v1208
    %v1269 = vpack.c.b16 %v1213, %v1211
    %v1270 = vpack.c.b16 %v1214, %v1212
    %v1271 = vpack.c.b16 %v1217, %v1215
    %v1272 = vpack.c.b16 %v1218, %v1216
    %v1273 = vpack.c.b16 %v1221, %v1219
    %v1274 = vpack.c.b16 %v1222, %v1220
    %v1275 = vpack.c.b16 %v1225, %v1223
    %v1276 = vpack.c.b16 %v1226, %v1224
    %v1277 = vpack.c.b16 %v1229, %v1227
    %v1278 = vpack.c.b16 %v1230, %v1228
    %v1279 = vpack.c.b16 %v1233, %v1231
    %v1280 = vpack.c.b16 %v1234, %v1232
    %v1281 = vpack.c.b16 %v1237, %v1235
    %v1282 = vpack.c.b16 %v1238, %v1236
    %v1283 = vpack.c.b16 %v1241, %v1239
    %v1284 = vpack.c.b16 %v1242, %v1240
    %v1285 = vpack.c.b16 %v1245, %v1243
    %v1286 = vpack.c.b16 %v1246, %v1244
    %v1287 = vpack.c.b16 %v1249, %v1247
    %v1288 = vpack.c.b16 %v1250, %v1248
    %v1289 = vpack.c.b16 %v1253, %v1251
    %v1290 = vpack.c.b16 %v1254, %v1252
    %v1291 = vpack.c.b16 %v1257, %v1255
    %v1292 = vpack.c.b16 %v1258, %v1256
    %v1293 = vpack.c.b16 %v1261, %v1259
    %v1294 = vpack.c.b16 %v1262, %v1260
    %1327 = vmatprep.subr.bf16.mxu0 %v1278
    %1328 = vmatpush1.bf16.msra.mxu0 %v1277
    %1329 = vmatprep.subr.bf16.mxu0 %v1276
    %1330 = vmatpush1.bf16.msra.mxu0 %v1275
    %1331 = vmatprep.subr.bf16.mxu0 %v1274
    %1332 = vmatpush1.bf16.msra.mxu0 %v1273
    %1333 = vmatprep.subr.bf16.mxu0 %v1272
    %1334 = vmatpush1.bf16.msra.mxu0 %v1271
    %1335 = vmatprep.subr.bf16.mxu0 %v1270
    %1336 = vmatpush1.bf16.msra.mxu0 %v1269
    %1337 = vmatprep.subr.bf16.mxu0 %v1268
    %1338 = vmatpush1.bf16.msra.mxu0 %v1267
    %1339 = vmatprep.subr.bf16.mxu0 %v1266
    %1340 = vmatpush1.bf16.msra.mxu0 %v1265
    %1341 = vmatprep.subr.bf16.mxu0 %v1264
    %1342 = vmatpush1.bf16.msra.mxu0 %v1263
    %1343 = vmatprep.subr.bf16.mxu0 %v1294
    %1344 = vmatpush2.bf16.msra.mxu0 %v1293
    %1345 = vmatprep.subr.bf16.mxu0 %v1292
    %1346 = vmatpush2.bf16.msra.mxu0 %v1291
    %1347 = vmatprep.subr.bf16.mxu0 %v1290
    %1348 = vmatpush2.bf16.msra.mxu0 %v1289
    %1349 = vmatprep.subr.bf16.mxu0 %v1288
    %1350 = vmatpush2.bf16.msra.mxu0 %v1287
    %1351 = vmatprep.subr.bf16.mxu0 %v1286
    %1352 = vmatpush2.bf16.msra.mxu0 %v1285
    %1353 = vmatprep.subr.bf16.mxu0 %v1284
    %1354 = vmatpush2.bf16.msra.mxu0 %v1283
    %1355 = vmatprep.subr.bf16.mxu0 %v1282
    %1356 = vmatpush2.bf16.msra.mxu0 %v1281
    %1357 = vmatprep.subr.bf16.mxu0 %v1280
    %1358 = vmatpush2.bf16.msra.mxu0 %v1279
    %1359 = vmatprep.mubr.bf16.mxu0 %v1134
    %1360 = vmatmul.mubr.bf16.gmra.mxu0 %v1133
    %v1361 = vpop.f32.mrf.mxu0
    %v1362 = vadd.f32 0.0, %v1361
    %v1363 = vpop.f32.mrf.mxu0
    %v1364 = vadd.f32 0.0, %v1363
    %v1365 = vpop.f32.mrf.mxu0
    %v1366 = vpop.f32.mrf.mxu0
    %1367 = vdwg.mxu0
    %1368 = vst [vmem:[#allocation10] sm:$0xff] %v1362
    %1369 = vst [vmem:[#allocation10 + $0x8] sm:$0xff] %v1364
    // Predicated region
    $region46: #{tpu_custom_call.1} parent=1 // pred_check
      _
    $region47: #{tpu_custom_call.1} parent=1 // pred_check_branch
      %1371 = sbr.rel (0) target = $region49
    $region48: #{tpu_custom_call.1} parent=1 // pred_region
      %s1373 = ssub.s32 256, 256
      %1374 = vsyncadd [#allocation4], %s1373
      %s1376 = sshll.u32 [#allocation10], 4
      %s1377 = int_to_ptr.vmem [resolvable:$true] %s1376
      %1379 = dma.vmem_to_hbm [thread:$0]  %s1377, 256, %s7, [#allocation4]
    $region49: #{tpu_custom_call.1} parent=1 // pred_fallthru
      _
    // Predicated region
    $region50: #{tpu_custom_call.1} parent=1 // pred_check
      _
    $region51: #{tpu_custom_call.1} parent=1 // pred_check_branch
      %1381 = sbr.rel (0) target = $region53
    $region52: #{tpu_custom_call.1} parent=1 // pred_region
      %s1383 = ssub.s32 256, 256
      %1384 = vsyncadd [#allocation12], %s1383
      %s1386 = sshll.u32 [#allocation11], 4
      %s1387 = int_to_ptr.vmem [resolvable:$true] %s1386
      %1389 = dma.vmem_to_hbm [thread:$0]  %s1387, 256, %s8, [#allocation12]
    $region53: #{tpu_custom_call.1} parent=1 // pred_fallthru
      _
    // Predicated region
    $region54: #{tpu_custom_call.1} parent=1 // pred_check
      _
    $region55: #{tpu_custom_call.1} parent=1 // pred_check_branch
      %1391 = sbr.rel (0) target = $region57
    $region56: #{tpu_custom_call.1} parent=1 // pred_region
      %1392 = dma.done [#allocation4], 256
    $region57: #{tpu_custom_call.1} parent=1 // pred_fallthru
      _
    // Predicated region
    $region58: #{tpu_custom_call.1} parent=1 // pred_check
      _
    $region59: #{tpu_custom_call.1} parent=1 // pred_check_branch
      %1394 = sbr.rel (0) target = $region61
    $region60: #{tpu_custom_call.1} parent=1 // pred_region
      %1395 = dma.done [#allocation12], 256
    $region61: #{tpu_custom_call.1} parent=1 // pred_fallthru
      _
    %1396 = vsyncpa [#allocation3], 1
    %1397 = vsyncpa [#allocation6], 1
    %1398 = vsyncpa [#allocation9], 1
    %1399 = vsyncpa [#allocation4], 1
    %1400 = vsyncpa [#allocation12], 1

// kernel: tpu_custom_call.1
$region0: #{tpu_custom_call.1}
  #allocation0 [shape = 'u32[]', space=smem, size = 0x4, offset = 0x4, fixed_abs, tag = 'smem constant byte address 0x4 - core index']
  #allocation1 [shape = 'u32[144,128]{1,0:T(1,128)}', space=vmem, size = 0x12000, scoped, tag = 'internal scratch']
  %s0 = inlined_call_operand.hbm [shape: f32[8,256], index: 0, kind: input, shape index: {}]
  %s1 = inlined_call_operand.hbm [shape: bf16[256,768], index: 1, kind: input, shape index: {}]
  %s2 = inlined_call_operand.hbm [shape: bf16[256,256], index: 2, kind: input, shape index: {}]
  %s3 = inlined_call_operand.vmem [shape: f32[1,256], index: 3, kind: input, shape index: {}]
  %s4 = inlined_call_operand.vmem [shape: f32[1,256], index: 4, kind: input, shape index: {}]
  %s5 = inlined_call_operand.vmem [shape: f32[1,256], index: 5, kind: input, shape index: {}]
  %s6 = inlined_call_operand.hbm [shape: bf16[256,256], index: 6, kind: input, shape index: {}]
  %s7 = inlined_call_operand.hbm [shape: f32[8,256], index: 7, kind: output, shape index: {0}]
  %s8 = inlined_call_operand.hbm [shape: f32[8,256], index: 8, kind: output, shape index: {1}]
  %9 = xla_tuple %s7, %s8
  %s10 = sld [smem:[#allocation0]]
  $region62: #{tpu_custom_call.1} parent=0
    _
  %s12 = ssub.s32 1, %s10
  %s13 = scalar_select 0, %s12, %s10
  $region1: #{tpu_custom_call.1} parent=0
    #allocation2 [shape = 'u8[8192]{0}', space=vmem, size = 0x2000, scoped, tag = 'input window, operand 0, single buffered']
    #allocation3 [shape = 's32[1]{0}', space=sflag, size = 0x4, scoped, tag = 'scoped memory for tpu_custom_call.1']
    #allocation4 [shape = 's32[1]{0}', space=sflag, size = 0x4, scoped, tag = 'scoped memory for tpu_custom_call.1']
    #allocation5 [shape = 'u8[393216]{0}', space=vmem, size = 0x60000, scoped, tag = 'input window, operand 1, single buffered']
    #allocation6 [shape = 's32[1]{0}', space=sflag, size = 0x4, scoped, tag = 'scoped memory for tpu_custom_call.1']
    #allocation7 [shape = 'u8[131072]{0}', space=vmem, size = 0x20000, scoped, tag = 'input window, operand 2, single buffered']
    #allocation8 [shape = 'u8[131072]{0}', space=vmem, size = 0x20000, scoped, tag = 'input window, operand 6, single buffered']
    #allocation9 [shape = 's32[1]{0}', space=sflag, size = 0x4, scoped, tag = 'scoped memory for tpu_custom_call.1']
    #allocation10 [shape = 'u8[8192]{0}', space=vmem, size = 0x2000, scoped, tag = 'output window, operand 0, single buffered']
    #allocation11 [shape = 'u8[8192]{0}', space=vmem, size = 0x2000, scoped, tag = 'output window, operand 1, single buffered']
    #allocation12 [shape = 's32[1]{0}', space=sflag, size = 0x4, scoped, tag = 'scoped memory for tpu_custom_call.1']
    %14 = vsyncpa [#allocation3], 0
    %15 = vsyncpa [#allocation6], 0
    %16 = vsyncpa [#allocation9], 0
    %17 = vsyncpa [#allocation4], 0
    %18 = vsyncpa [#allocation12], 0
    // Predicated region
    $region2: #{tpu_custom_call.1} parent=1 // pred_check
      _
    $region3: #{tpu_custom_call.1} parent=1 // pred_check_branch
      %20 = sbr.rel (0) target = $region5
    $region4: #{tpu_custom_call.1} parent=1 // pred_region
      %s22 = ssub.s32 256, 256
      %23 = vsyncadd [#allocation3], %s22
      %s25 = sshll.u32 [#allocation2], 4
      %s26 = int_to_ptr.vmem [resolvable:$true] %s25
      %28 = dma.hbm_to_vmem [thread:$0]  %s0, 256, %s26, [#allocation3]
    $region5: #{tpu_custom_call.1} parent=1 // pred_fallthru
      _
    // Predicated region
    $region6: #{tpu_custom_call.1} parent=1 // pred_check
      _
    $region7: #{tpu_custom_call.1} parent=1 // pred_check_branch
      %30 = sbr.rel (0) target = $region9
    $region8: #{tpu_custom_call.1} parent=1 // pred_region
      %s32 = ssub.s32 12288, 12288
      %33 = vsyncadd [#allocation6], %s32
      %s34 = sshll.u32 [#allocation5], 4
      %s35 = int_to_ptr.vmem [resolvable:$true] %s34
      %40 = dma.hbm_to_vmem [thread:$0]  %s1, 12288, %s35, [#allocation6], 384, 384, 24
    $region9: #{tpu_custom_call.1} parent=1 // pred_fallthru
      _
    // Predicated region
    $region10: #{tpu_custom_call.1} parent=1 // pred_check
      _
    $region11: #{tpu_custom_call.1} parent=1 // pred_check_branch
      %42 = sbr.rel (0) target = $region13
    $region12: #{tpu_custom_call.1} parent=1 // pred_region
      %s44 = ssub.s32 4096, 4096
      %45 = vsyncadd [#allocation6], %s44
      %s46 = sshll.u32 [#allocation7], 4
      %s47 = int_to_ptr.vmem [resolvable:$true] %s46
      %52 = dma.hbm_to_vmem [thread:$0]  %s2, 4096, %s47, [#allocation6], 128, 128, 8
    $region13: #{tpu_custom_call.1} parent=1 // pred_fallthru
      _
    // Predicated region
    $region14: #{tpu_custom_call.1} parent=1 // pred_check
      _
    $region15: #{tpu_custom_call.1} parent=1 // pred_check_branch
      %54 = sbr.rel (0) target = $region17
    $region16: #{tpu_custom_call.1} parent=1 // pred_region
      _
    $region17: #{tpu_custom_call.1} parent=1 // pred_fallthru
      _
    // Predicated region
    $region18: #{tpu_custom_call.1} parent=1 // pred_check
      _
    $region19: #{tpu_custom_call.1} parent=1 // pred_check_branch
      %56 = sbr.rel (0) target = $region21
    $region20: #{tpu_custom_call.1} parent=1 // pred_region
      _
    $region21: #{tpu_custom_call.1} parent=1 // pred_fallthru
      _
    // Predicated region
    $region22: #{tpu_custom_call.1} parent=1 // pred_check
      _
    $region23: #{tpu_custom_call.1} parent=1 // pred_check_branch
      %58 = sbr.rel (0) target = $region25
    $region24: #{tpu_custom_call.1} parent=1 // pred_region
      _
    $region25: #{tpu_custom_call.1} parent=1 // pred_fallthru
      _
    // Predicated region
    $region26: #{tpu_custom_call.1} parent=1 // pred_check
      _
    $region27: #{tpu_custom_call.1} parent=1 // pred_check_branch
      %60 = sbr.rel (0) target = $region29
    $region28: #{tpu_custom_call.1} parent=1 // pred_region
      %s62 = ssub.s32 4096, 4096
      %63 = vsyncadd [#allocation9], %s62
      %s64 = sshll.u32 [#allocation8], 4
      %s65 = int_to_ptr.vmem [resolvable:$true] %s64
      %70 = dma.hbm_to_vmem [thread:$0]  %s6, 4096, %s65, [#allocation9], 128, 128, 8
    $region29: #{tpu_custom_call.1} parent=1 // pred_fallthru
      _
    // Predicated region
    $region30: #{tpu_custom_call.1} parent=1 // pred_check
      _
    $region31: #{tpu_custom_call.1} parent=1 // pred_check_branch
      %72 = sbr.rel (0) target = $region33
    $region32: #{tpu_custom_call.1} parent=1 // pred_region
      %73 = dma.done [#allocation3], 256
    $region33: #{tpu_custom_call.1} parent=1 // pred_fallthru
      _
    // Predicated region
    $region34: #{tpu_custom_call.1} parent=1 // pred_check
      _
    $region35: #{tpu_custom_call.1} parent=1 // pred_check_branch
      %75 = sbr.rel (0) target = $region37
    $region36: #{tpu_custom_call.1} parent=1 // pred_region
      %76 = dma.done [#allocation6], 12288
    $region37: #{tpu_custom_call.1} parent=1 // pred_fallthru
      _
    // Predicated region
    $region38: #{tpu_custom_call.1} parent=1 // pred_check
      _
    $region39: #{tpu_custom_call.1} parent=1 // pred_check_branch
      %78 = sbr.rel (0) target = $region41
    $region40: #{tpu_custom_call.1} parent=1 // pred_region
      %79 = dma.done [#allocation6], 4096
    $region41: #{tpu_custom_call.1} parent=1 // pred_fallthru
      _
    // Predicated region
    $region42: #{tpu_custom_call.1} parent=1 // pred_check
      _
    $region43: #{tpu_custom_call.1} parent=1 // pred_check_branch
      %81 = sbr.rel (0) target = $region45
    $region44: #{tpu_custom_call.1} parent=1 // pred_region
      %82 = dma.done [#allocation9], 4096
    $region45: #{tpu_custom_call.1} parent=1 // pred_fallthru
      _
    %v83 = vld [vmem:[#allocation2] sm:$0xff]
    %v84 = vld [vmem:[#allocation2 + $0x8] sm:$0xff]
    %v85 = vpack.c.bf16 %v83, %v83
    %v86 = vpack.c.bf16 %v84, %v84
    %v87 = vld [vmem:[#allocation5] sm:$0xff]
    %v88 = vld [vmem:[#allocation5 + $0x8] sm:$0xff]
    %v89 = vld [vmem:[#allocation5 + $0x10] sm:$0xff]
    %v90 = vld [vmem:[#allocation5 + $0x18] sm:$0xff]
    %v91 = vld [vmem:[#allocation5 + $0x20] sm:$0xff]
    %v92 = vld [vmem:[#allocation5 + $0x28] sm:$0xff]
    %v93 = vld [vmem:[#allocation5 + $0x30] sm:$0xff]
    %v94 = vld [vmem:[#allocation5 + $0x38] sm:$0xff]
    %v95 = vld [vmem:[#allocation5 + $0x40] sm:$0xff]
    %v96 = vld [vmem:[#allocation5 + $0x48] sm:$0xff]
    %v97 = vld [vmem:[#allocation5 + $0x50] sm:$0xff]
    %v98 = vld [vmem:[#allocation5 + $0x58] sm:$0xff]
    %v99 = vld [vmem:[#allocation5 + $0x60] sm:$0xff]
    %v100 = vld [vmem:[#allocation5 + $0x68] sm:$0xff]
    %v101 = vld [vmem:[#allocation5 + $0x70] sm:$0xff]
    %v102 = vld [vmem:[#allocation5 + $0x78] sm:$0xff]
    %v103 = vld [vmem:[#allocation5 + $0x80] sm:$0xff]
    %v104 = vld [vmem:[#allocation5 + $0x88] sm:$0xff]
    %v105 = vld [vmem:[#allocation5 + $0x90] sm:$0xff]
    %v106 = vld [vmem:[#allocation5 + $0x98] sm:$0xff]
    %v107 = vld [vmem:[#allocation5 + $0xa0] sm:$0xff]
    %v108 = vld [vmem:[#allocation5 + $0xa8] sm:$0xff]
    %v109 = vld [vmem:[#allocation5 + $0xb0] sm:$0xff]
    %v110 = vld [vmem:[#allocation5 + $0xb8] sm:$0xff]
    %v111 = vld [vmem:[#allocation5 + $0xc0] sm:$0xff]
    %v112 = vld [vmem:[#allocation5 + $0xc8] sm:$0xff]
    %v113 = vld [vmem:[#allocation5 + $0xd0] sm:$0xff]
    %v114 = vld [vmem:[#allocation5 + $0xd8] sm:$0xff]
    %v115 = vld [vmem:[#allocation5 + $0xe0] sm:$0xff]
    %v116 = vld [vmem:[#allocation5 + $0xe8] sm:$0xff]
    %v117 = vld [vmem:[#allocation5 + $0xf0] sm:$0xff]
    %v118 = vld [vmem:[#allocation5 + $0xf8] sm:$0xff]
    %v119 = vld [vmem:[#allocation5 + $0x100] sm:$0xff]
    %v120 = vld [vmem:[#allocation5 + $0x108] sm:$0xff]
    %v121 = vld [vmem:[#allocation5 + $0x110] sm:$0xff]
    %v122 = vld [vmem:[#allocation5 + $0x118] sm:$0xff]
    %v123 = vld [vmem:[#allocation5 + $0x120] sm:$0xff]
    %v124 = vld [vmem:[#allocation5 + $0x128] sm:$0xff]
    %v125 = vld [vmem:[#allocation5 + $0x130] sm:$0xff]
    %v126 = vld [vmem:[#allocation5 + $0x138] sm:$0xff]
    %v127 = vld [vmem:[#allocation5 + $0x140] sm:$0xff]
    %v128 = vld [vmem:[#allocation5 + $0x148] sm:$0xff]
    %v129 = vld [vmem:[#allocation5 + $0x150] sm:$0xff]
    %v130 = vld [vmem:[#allocation5 + $0x158] sm:$0xff]
    %v131 = vld [vmem:[#allocation5 + $0x160] sm:$0xff]
    %v132 = vld [vmem:[#allocation5 + $0x168] sm:$0xff]
    %v133 = vld [vmem:[#allocation5 + $0x170] sm:$0xff]
    %v134 = vld [vmem:[#allocation5 + $0x178] sm:$0xff]
    %v135 = vld [vmem:[#allocation5 + $0x180] sm:$0xff]
    %v136 = vld [vmem:[#allocation5 + $0x188] sm:$0xff]
    %v137 = vld [vmem:[#allocation5 + $0x190] sm:$0xff]
    %v138 = vld [vmem:[#allocation5 + $0x198] sm:$0xff]
    %v139 = vld [vmem:[#allocation5 + $0x1a0] sm:$0xff]
    %v140 = vld [vmem:[#allocation5 + $0x1a8] sm:$0xff]
    %v141 = vld [vmem:[#allocation5 + $0x1b0] sm:$0xff]
    %v142 = vld [vmem:[#allocation5 + $0x1b8] sm:$0xff]
    %v143 = vld [vmem:[#allocation5 + $0x1c0] sm:$0xff]
    %v144 = vld [vmem:[#allocation5 + $0x1c8] sm:$0xff]
    %v145 = vld [vmem:[#allocation5 + $0x1d0] sm:$0xff]
    %v146 = vld [vmem:[#allocation5 + $0x1d8] sm:$0xff]
    %v147 = vld [vmem:[#allocation5 + $0x1e0] sm:$0xff]
    %v148 = vld [vmem:[#allocation5 + $0x1e8] sm:$0xff]
    %v149 = vld [vmem:[#allocation5 + $0x1f0] sm:$0xff]
    %v150 = vld [vmem:[#allocation5 + $0x1f8] sm:$0xff]
    %v151 = vld [vmem:[#allocation5 + $0x200] sm:$0xff]
    %v152 = vld [vmem:[#allocation5 + $0x208] sm:$0xff]
    %v153 = vld [vmem:[#allocation5 + $0x210] sm:$0xff]
    %v154 = vld [vmem:[#allocation5 + $0x218] sm:$0xff]
    %v155 = vld [vmem:[#allocation5 + $0x220] sm:$0xff]
    %v156 = vld [vmem:[#allocation5 + $0x228] sm:$0xff]
    %v157 = vld [vmem:[#allocation5 + $0x230] sm:$0xff]
    %v158 = vld [vmem:[#allocation5 + $0x238] sm:$0xff]
    %v159 = vld [vmem:[#allocation5 + $0x240] sm:$0xff]
    %v160 = vld [vmem:[#allocation5 + $0x248] sm:$0xff]
    %v161 = vld [vmem:[#allocation5 + $0x250] sm:$0xff]
    %v162 = vld [vmem:[#allocation5 + $0x258] sm:$0xff]
    %v163 = vld [vmem:[#allocation5 + $0x260] sm:$0xff]
    %v164 = vld [vmem:[#allocation5 + $0x268] sm:$0xff]
    %v165 = vld [vmem:[#allocation5 + $0x270] sm:$0xff]
    %v166 = vld [vmem:[#allocation5 + $0x278] sm:$0xff]
    %v167 = vld [vmem:[#allocation5 + $0x280] sm:$0xff]
    %v168 = vld [vmem:[#allocation5 + $0x288] sm:$0xff]
    %v169 = vld [vmem:[#allocation5 + $0x290] sm:$0xff]
    %v170 = vld [vmem:[#allocation5 + $0x298] sm:$0xff]
    %v171 = vld [vmem:[#allocation5 + $0x2a0] sm:$0xff]
    %v172 = vld [vmem:[#allocation5 + $0x2a8] sm:$0xff]
    %v173 = vld [vmem:[#allocation5 + $0x2b0] sm:$0xff]
    %v174 = vld [vmem:[#allocation5 + $0x2b8] sm:$0xff]
    %v175 = vld [vmem:[#allocation5 + $0x2c0] sm:$0xff]
    %v176 = vld [vmem:[#allocation5 + $0x2c8] sm:$0xff]
    %v177 = vld [vmem:[#allocation5 + $0x2d0] sm:$0xff]
    %v178 = vld [vmem:[#allocation5 + $0x2d8] sm:$0xff]
    %v179 = vld [vmem:[#allocation5 + $0x2e0] sm:$0xff]
    %v180 = vld [vmem:[#allocation5 + $0x2e8] sm:$0xff]
    %v181 = vld [vmem:[#allocation5 + $0x2f0] sm:$0xff]
    %v182 = vld [vmem:[#allocation5 + $0x2f8] sm:$0xff]
    %v279 = vunpack.c.l.b16 %v87
    %v280 = vunpack.c.h.b16 %v87
    %v281 = vunpack.c.l.b16 %v88
    %v282 = vunpack.c.h.b16 %v88
    %v283 = vunpack.c.l.b16 %v89
    %v284 = vunpack.c.h.b16 %v89
    %v285 = vunpack.c.l.b16 %v90
    %v286 = vunpack.c.h.b16 %v90
    %v287 = vunpack.c.l.b16 %v91
    %v288 = vunpack.c.h.b16 %v91
    %v289 = vunpack.c.l.b16 %v92
    %v290 = vunpack.c.h.b16 %v92
    %v291 = vunpack.c.l.b16 %v93
    %v292 = vunpack.c.h.b16 %v93
    %v293 = vunpack.c.l.b16 %v94
    %v294 = vunpack.c.h.b16 %v94
    %v295 = vunpack.c.l.b16 %v95
    %v296 = vunpack.c.h.b16 %v95
    %v297 = vunpack.c.l.b16 %v96
    %v298 = vunpack.c.h.b16 %v96
    %v299 = vunpack.c.l.b16 %v97
    %v300 = vunpack.c.h.b16 %v97
    %v301 = vunpack.c.l.b16 %v98
    %v302 = vunpack.c.h.b16 %v98
    %v303 = vunpack.c.l.b16 %v99
    %v304 = vunpack.c.h.b16 %v99
    %v305 = vunpack.c.l.b16 %v100
    %v306 = vunpack.c.h.b16 %v100
    %v307 = vunpack.c.l.b16 %v101
    %v308 = vunpack.c.h.b16 %v101
    %v309 = vunpack.c.l.b16 %v102
    %v310 = vunpack.c.h.b16 %v102
    %v311 = vunpack.c.l.b16 %v103
    %v312 = vunpack.c.h.b16 %v103
    %v313 = vunpack.c.l.b16 %v104
    %v314 = vunpack.c.h.b16 %v104
    %v315 = vunpack.c.l.b16 %v105
    %v316 = vunpack.c.h.b16 %v105
    %v317 = vunpack.c.l.b16 %v106
    %v318 = vunpack.c.h.b16 %v106
    %v319 = vunpack.c.l.b16 %v107
    %v320 = vunpack.c.h.b16 %v107
    %v321 = vunpack.c.l.b16 %v108
    %v322 = vunpack.c.h.b16 %v108
    %v323 = vunpack.c.l.b16 %v109
    %v324 = vunpack.c.h.b16 %v109
    %v325 = vunpack.c.l.b16 %v110
    %v326 = vunpack.c.h.b16 %v110
    %v327 = vunpack.c.l.b16 %v111
    %v328 = vunpack.c.h.b16 %v111
    %v329 = vunpack.c.l.b16 %v112
    %v330 = vunpack.c.h.b16 %v112
    %v331 = vunpack.c.l.b16 %v113
    %v332 = vunpack.c.h.b16 %v113
    %v333 = vunpack.c.l.b16 %v114
    %v334 = vunpack.c.h.b16 %v114
    %v335 = vunpack.c.l.b16 %v115
    %v336 = vunpack.c.h.b16 %v115
    %v337 = vunpack.c.l.b16 %v116
    %v338 = vunpack.c.h.b16 %v116
    %v339 = vunpack.c.l.b16 %v117
    %v340 = vunpack.c.h.b16 %v117
    %v341 = vunpack.c.l.b16 %v118
    %v342 = vunpack.c.h.b16 %v118
    %v343 = vunpack.c.l.b16 %v119
    %v344 = vunpack.c.h.b16 %v119
    %v345 = vunpack.c.l.b16 %v120
    %v346 = vunpack.c.h.b16 %v120
    %v347 = vunpack.c.l.b16 %v121
    %v348 = vunpack.c.h.b16 %v121
    %v349 = vunpack.c.l.b16 %v122
    %v350 = vunpack.c.h.b16 %v122
    %v351 = vunpack.c.l.b16 %v123
    %v352 = vunpack.c.h.b16 %v123
    %v353 = vunpack.c.l.b16 %v124
    %v354 = vunpack.c.h.b16 %v124
    %v355 = vunpack.c.l.b16 %v125
    %v356 = vunpack.c.h.b16 %v125
    %v357 = vunpack.c.l.b16 %v126
    %v358 = vunpack.c.h.b16 %v126
    %v359 = vunpack.c.l.b16 %v127
    %v360 = vunpack.c.h.b16 %v127
    %v361 = vunpack.c.l.b16 %v128
    %v362 = vunpack.c.h.b16 %v128
    %v363 = vunpack.c.l.b16 %v129
    %v364 = vunpack.c.h.b16 %v129
    %v365 = vunpack.c.l.b16 %v130
    %v366 = vunpack.c.h.b16 %v130
    %v367 = vunpack.c.l.b16 %v131
    %v368 = vunpack.c.h.b16 %v131
    %v369 = vunpack.c.l.b16 %v132
    %v370 = vunpack.c.h.b16 %v132
    %v371 = vunpack.c.l.b16 %v133
    %v372 = vunpack.c.h.b16 %v133
    %v373 = vunpack.c.l.b16 %v134
    %v374 = vunpack.c.h.b16 %v134
    %v375 = vunpack.c.l.b16 %v135
    %v376 = vunpack.c.h.b16 %v135
    %v377 = vunpack.c.l.b16 %v136
    %v378 = vunpack.c.h.b16 %v136
    %v379 = vunpack.c.l.b16 %v137
    %v380 = vunpack.c.h.b16 %v137
    %v381 = vunpack.c.l.b16 %v138
    %v382 = vunpack.c.h.b16 %v138
    %v383 = vunpack.c.l.b16 %v139
    %v384 = vunpack.c.h.b16 %v139
    %v385 = vunpack.c.l.b16 %v140
    %v386 = vunpack.c.h.b16 %v140
    %v387 = vunpack.c.l.b16 %v141
    %v388 = vunpack.c.h.b16 %v141
    %v389 = vunpack.c.l.b16 %v142
    %v390 = vunpack.c.h.b16 %v142
    %v391 = vunpack.c.l.b16 %v143
    %v392 = vunpack.c.h.b16 %v143
    %v393 = vunpack.c.l.b16 %v144
    %v394 = vunpack.c.h.b16 %v144
    %v395 = vunpack.c.l.b16 %v145
    %v396 = vunpack.c.h.b16 %v145
    %v397 = vunpack.c.l.b16 %v146
    %v398 = vunpack.c.h.b16 %v146
    %v399 = vunpack.c.l.b16 %v147
    %v400 = vunpack.c.h.b16 %v147
    %v401 = vunpack.c.l.b16 %v148
    %v402 = vunpack.c.h.b16 %v148
    %v403 = vunpack.c.l.b16 %v149
    %v404 = vunpack.c.h.b16 %v149
    %v405 = vunpack.c.l.b16 %v150
    %v406 = vunpack.c.h.b16 %v150
    %v407 = vunpack.c.l.b16 %v151
    %v408 = vunpack.c.h.b16 %v151
    %v409 = vunpack.c.l.b16 %v152
    %v410 = vunpack.c.h.b16 %v152
    %v411 = vunpack.c.l.b16 %v153
    %v412 = vunpack.c.h.b16 %v153
    %v413 = vunpack.c.l.b16 %v154
    %v414 = vunpack.c.h.b16 %v154
    %v415 = vunpack.c.l.b16 %v155
    %v416 = vunpack.c.h.b16 %v155
    %v417 = vunpack.c.l.b16 %v156
    %v418 = vunpack.c.h.b16 %v156
    %v419 = vunpack.c.l.b16 %v157
    %v420 = vunpack.c.h.b16 %v157
    %v421 = vunpack.c.l.b16 %v158
    %v422 = vunpack.c.h.b16 %v158
    %v423 = vunpack.c.l.b16 %v159
    %v424 = vunpack.c.h.b16 %v159
    %v425 = vunpack.c.l.b16 %v160
    %v426 = vunpack.c.h.b16 %v160
    %v427 = vunpack.c.l.b16 %v161
    %v428 = vunpack.c.h.b16 %v161
    %v429 = vunpack.c.l.b16 %v162
    %v430 = vunpack.c.h.b16 %v162
    %v431 = vunpack.c.l.b16 %v163
    %v432 = vunpack.c.h.b16 %v163
    %v433 = vunpack.c.l.b16 %v164
    %v434 = vunpack.c.h.b16 %v164
    %v435 = vunpack.c.l.b16 %v165
    %v436 = vunpack.c.h.b16 %v165
    %v437 = vunpack.c.l.b16 %v166
    %v438 = vunpack.c.h.b16 %v166
    %v439 = vunpack.c.l.b16 %v167
    %v440 = vunpack.c.h.b16 %v167
    %v441 = vunpack.c.l.b16 %v168
    %v442 = vunpack.c.h.b16 %v168
    %v443 = vunpack.c.l.b16 %v169
    %v444 = vunpack.c.h.b16 %v169
    %v445 = vunpack.c.l.b16 %v170
    %v446 = vunpack.c.h.b16 %v170
    %v447 = vunpack.c.l.b16 %v171
    %v448 = vunpack.c.h.b16 %v171
    %v449 = vunpack.c.l.b16 %v172
    %v450 = vunpack.c.h.b16 %v172
    %v451 = vunpack.c.l.b16 %v173
    %v452 = vunpack.c.h.b16 %v173
    %v453 = vunpack.c.l.b16 %v174
    %v454 = vunpack.c.h.b16 %v174
    %v455 = vunpack.c.l.b16 %v175
    %v456 = vunpack.c.h.b16 %v175
    %v457 = vunpack.c.l.b16 %v176
    %v458 = vunpack.c.h.b16 %v176
    %v459 = vunpack.c.l.b16 %v177
    %v460 = vunpack.c.h.b16 %v177
    %v461 = vunpack.c.l.b16 %v178
    %v462 = vunpack.c.h.b16 %v178
    %v463 = vunpack.c.l.b16 %v179
    %v464 = vunpack.c.h.b16 %v179
    %v465 = vunpack.c.l.b16 %v180
    %v466 = vunpack.c.h.b16 %v180
    %v467 = vunpack.c.l.b16 %v181
    %v468 = vunpack.c.h.b16 %v181
    %v469 = vunpack.c.l.b16 %v182
    %v470 = vunpack.c.h.b16 %v182
    %v471 = vpack.c.b16 %v285, %v279
    %v472 = vpack.c.b16 %v286, %v280
    %v473 = vpack.c.b16 %v287, %v281
    %v474 = vpack.c.b16 %v288, %v282
    %v475 = vpack.c.b16 %v289, %v283
    %v476 = vpack.c.b16 %v290, %v284
    %v477 = vpack.c.b16 %v297, %v291
    %v478 = vpack.c.b16 %v298, %v292
    %v479 = vpack.c.b16 %v299, %v293
    %v480 = vpack.c.b16 %v300, %v294
    %v481 = vpack.c.b16 %v301, %v295
    %v482 = vpack.c.b16 %v302, %v296
    %v483 = vpack.c.b16 %v309, %v303
    %v484 = vpack.c.b16 %v310, %v304
    %v485 = vpack.c.b16 %v311, %v305
    %v486 = vpack.c.b16 %v312, %v306
    %v487 = vpack.c.b16 %v313, %v307
    %v488 = vpack.c.b16 %v314, %v308
    %v489 = vpack.c.b16 %v321, %v315
    %v490 = vpack.c.b16 %v322, %v316
    %v491 = vpack.c.b16 %v323, %v317
    %v492 = vpack.c.b16 %v324, %v318
    %v493 = vpack.c.b16 %v325, %v319
    %v494 = vpack.c.b16 %v326, %v320
    %v495 = vpack.c.b16 %v333, %v327
    %v496 = vpack.c.b16 %v334, %v328
    %v497 = vpack.c.b16 %v335, %v329
    %v498 = vpack.c.b16 %v336, %v330
    %v499 = vpack.c.b16 %v337, %v331
    %v500 = vpack.c.b16 %v338, %v332
    %v501 = vpack.c.b16 %v345, %v339
    %v502 = vpack.c.b16 %v346, %v340
    %v503 = vpack.c.b16 %v347, %v341
    %v504 = vpack.c.b16 %v348, %v342
    %v505 = vpack.c.b16 %v349, %v343
    %v506 = vpack.c.b16 %v350, %v344
    %v507 = vpack.c.b16 %v357, %v351
    %v508 = vpack.c.b16 %v358, %v352
    %v509 = vpack.c.b16 %v359, %v353
    %v510 = vpack.c.b16 %v360, %v354
    %v511 = vpack.c.b16 %v361, %v355
    %v512 = vpack.c.b16 %v362, %v356
    %v513 = vpack.c.b16 %v369, %v363
    %v514 = vpack.c.b16 %v370, %v364
    %v515 = vpack.c.b16 %v371, %v365
    %v516 = vpack.c.b16 %v372, %v366
    %v517 = vpack.c.b16 %v373, %v367
    %v518 = vpack.c.b16 %v374, %v368
    %v519 = vpack.c.b16 %v381, %v375
    %v520 = vpack.c.b16 %v382, %v376
    %v521 = vpack.c.b16 %v383, %v377
    %v522 = vpack.c.b16 %v384, %v378
    %v523 = vpack.c.b16 %v385, %v379
    %v524 = vpack.c.b16 %v386, %v380
    %v525 = vpack.c.b16 %v393, %v387
    %v526 = vpack.c.b16 %v394, %v388
    %v527 = vpack.c.b16 %v395, %v389
    %v528 = vpack.c.b16 %v396, %v390
    %v529 = vpack.c.b16 %v397, %v391
    %v530 = vpack.c.b16 %v398, %v392
    %v531 = vpack.c.b16 %v405, %v399
    %v532 = vpack.c.b16 %v406, %v400
    %v533 = vpack.c.b16 %v407, %v401
    %v534 = vpack.c.b16 %v408, %v402
    %v535 = vpack.c.b16 %v409, %v403
    %v536 = vpack.c.b16 %v410, %v404
    %v537 = vpack.c.b16 %v417, %v411
    %v538 = vpack.c.b16 %v418, %v412
    %v539 = vpack.c.b16 %v419, %v413
    %v540 = vpack.c.b16 %v420, %v414
    %v541 = vpack.c.b16 %v421, %v415
    %v542 = vpack.c.b16 %v422, %v416
    %v543 = vpack.c.b16 %v429, %v423
    %v544 = vpack.c.b16 %v430, %v424
    %v545 = vpack.c.b16 %v431, %v425
    %v546 = vpack.c.b16 %v432, %v426
    %v547 = vpack.c.b16 %v433, %v427
    %v548 = vpack.c.b16 %v434, %v428
    %v549 = vpack.c.b16 %v441, %v435
    %v550 = vpack.c.b16 %v442, %v436
    %v551 = vpack.c.b16 %v443, %v437
    %v552 = vpack.c.b16 %v444, %v438
    %v553 = vpack.c.b16 %v445, %v439
    %v554 = vpack.c.b16 %v446, %v440
    %v555 = vpack.c.b16 %v453, %v447
    %v556 = vpack.c.b16 %v454, %v448
    %v557 = vpack.c.b16 %v455, %v449
    %v558 = vpack.c.b16 %v456, %v450
    %v559 = vpack.c.b16 %v457, %v451
    %v560 = vpack.c.b16 %v458, %v452
    %v561 = vpack.c.b16 %v465, %v459
    %v562 = vpack.c.b16 %v466, %v460
    %v563 = vpack.c.b16 %v467, %v461
    %v564 = vpack.c.b16 %v468, %v462
    %v565 = vpack.c.b16 %v469, %v463
    %v566 = vpack.c.b16 %v470, %v464
    %663 = vmatprep.subr.bf16.mxu0 %v514
    %664 = vmatpush1.bf16.msra.mxu0 %v513
    %665 = vmatprep.subr.bf16.mxu0 %v508
    %666 = vmatpush1.bf16.msra.mxu0 %v507
    %667 = vmatprep.subr.bf16.mxu0 %v502
    %668 = vmatpush1.bf16.msra.mxu0 %v501
    %669 = vmatprep.subr.bf16.mxu0 %v496
    %670 = vmatpush1.bf16.msra.mxu0 %v495
    %671 = vmatprep.subr.bf16.mxu0 %v490
    %672 = vmatpush1.bf16.msra.mxu0 %v489
    %673 = vmatprep.subr.bf16.mxu0 %v484
    %674 = vmatpush1.bf16.msra.mxu0 %v483
    %675 = vmatprep.subr.bf16.mxu0 %v478
    %676 = vmatpush1.bf16.msra.mxu0 %v477
    %677 = vmatprep.subr.bf16.mxu0 %v472
    %678 = vmatpush1.bf16.msra.mxu0 %v471
    %679 = vmatprep.subr.bf16.mxu0 %v562
    %680 = vmatpush2.bf16.msra.mxu0 %v561
    %681 = vmatprep.subr.bf16.mxu0 %v556
    %682 = vmatpush2.bf16.msra.mxu0 %v555
    %683 = vmatprep.subr.bf16.mxu0 %v550
    %684 = vmatpush2.bf16.msra.mxu0 %v549
    %685 = vmatprep.subr.bf16.mxu0 %v544
    %686 = vmatpush2.bf16.msra.mxu0 %v543
    %687 = vmatprep.subr.bf16.mxu0 %v538
    %688 = vmatpush2.bf16.msra.mxu0 %v537
    %689 = vmatprep.subr.bf16.mxu0 %v532
    %690 = vmatpush2.bf16.msra.mxu0 %v531
    %691 = vmatprep.subr.bf16.mxu0 %v526
    %692 = vmatpush2.bf16.msra.mxu0 %v525
    %693 = vmatprep.subr.bf16.mxu0 %v520
    %694 = vmatpush2.bf16.msra.mxu0 %v519
    %695 = vmatprep.mubr.bf16.mxu0 %v86
    %696 = vmatmul.mubr.bf16.gmra.mxu0 %v85
    %v697 = vpop.f32.mrf.mxu0
    %v698 = vadd.f32 0.0, %v697
    %v699 = vpop.f32.mrf.mxu0
    %v700 = vadd.f32 0.0, %v699
    %v701 = vpop.f32.mrf.mxu0
    %v702 = vpop.f32.mrf.mxu0
    %703 = vdwg.mxu0
    %704 = vmatprep.subr.bf16.mxu0 %v516
    %705 = vmatpush1.bf16.msra.mxu0 %v515
    %706 = vmatprep.subr.bf16.mxu0 %v510
    %707 = vmatpush1.bf16.msra.mxu0 %v509
    %708 = vmatprep.subr.bf16.mxu0 %v504
    %709 = vmatpush1.bf16.msra.mxu0 %v503
    %710 = vmatprep.subr.bf16.mxu0 %v498
    %711 = vmatpush1.bf16.msra.mxu0 %v497
    %712 = vmatprep.subr.bf16.mxu0 %v492
    %713 = vmatpush1.bf16.msra.mxu0 %v491
    %714 = vmatprep.subr.bf16.mxu0 %v486
    %715 = vmatpush1.bf16.msra.mxu0 %v485
    %716 = vmatprep.subr.bf16.mxu0 %v480
    %717 = vmatpush1.bf16.msra.mxu0 %v479
    %718 = vmatprep.subr.bf16.mxu0 %v474
    %719 = vmatpush1.bf16.msra.mxu0 %v473
    %720 = vmatprep.subr.bf16.mxu0 %v564
    %721 = vmatpush2.bf16.msra.mxu0 %v563
    %722 = vmatprep.subr.bf16.mxu0 %v558
    %723 = vmatpush2.bf16.msra.mxu0 %v557
    %724 = vmatprep.subr.bf16.mxu0 %v552
    %725 = vmatpush2.bf16.msra.mxu0 %v551
    %726 = vmatprep.subr.bf16.mxu0 %v546
    %727 = vmatpush2.bf16.msra.mxu0 %v545
    %728 = vmatprep.subr.bf16.mxu0 %v540
    %729 = vmatpush2.bf16.msra.mxu0 %v539
    %730 = vmatprep.subr.bf16.mxu0 %v534
    %731 = vmatpush2.bf16.msra.mxu0 %v533
    %732 = vmatprep.subr.bf16.mxu0 %v528
    %733 = vmatpush2.bf16.msra.mxu0 %v527
    %734 = vmatprep.subr.bf16.mxu0 %v522
    %735 = vmatpush2.bf16.msra.mxu0 %v521
    %736 = vmatprep.mubr.bf16.mxu0 %v86
    %737 = vmatmul.mubr.bf16.gmra.mxu0 %v85
    %v738 = vpop.f32.mrf.mxu0
    %v739 = vadd.f32 0.0, %v738
    %v740 = vpop.f32.mrf.mxu0
    %v741 = vadd.f32 0.0, %v740
    %v742 = vpop.f32.mrf.mxu0
    %v743 = vpop.f32.mrf.mxu0
    %744 = vdwg.mxu0
    %745 = vmatprep.subr.bf16.mxu0 %v518
    %746 = vmatpush1.bf16.msra.mxu0 %v517
    %747 = vmatprep.subr.bf16.mxu0 %v512
    %748 = vmatpush1.bf16.msra.mxu0 %v511
    %749 = vmatprep.subr.bf16.mxu0 %v506
    %750 = vmatpush1.bf16.msra.mxu0 %v505
    %751 = vmatprep.subr.bf16.mxu0 %v500
    %752 = vmatpush1.bf16.msra.mxu0 %v499
    %753 = vmatprep.subr.bf16.mxu0 %v494
    %754 = vmatpush1.bf16.msra.mxu0 %v493
    %755 = vmatprep.subr.bf16.mxu0 %v488
    %756 = vmatpush1.bf16.msra.mxu0 %v487
    %757 = vmatprep.subr.bf16.mxu0 %v482
    %758 = vmatpush1.bf16.msra.mxu0 %v481
    %759 = vmatprep.subr.bf16.mxu0 %v476
    %760 = vmatpush1.bf16.msra.mxu0 %v475
    %761 = vmatprep.subr.bf16.mxu0 %v566
    %762 = vmatpush2.bf16.msra.mxu0 %v565
    %763 = vmatprep.subr.bf16.mxu0 %v560
    %764 = vmatpush2.bf16.msra.mxu0 %v559
    %765 = vmatprep.subr.bf16.mxu0 %v554
    %766 = vmatpush2.bf16.msra.mxu0 %v553
    %767 = vmatprep.subr.bf16.mxu0 %v548
    %768 = vmatpush2.bf16.msra.mxu0 %v547
    %769 = vmatprep.subr.bf16.mxu0 %v542
    %770 = vmatpush2.bf16.msra.mxu0 %v541
    %771 = vmatprep.subr.bf16.mxu0 %v536
    %772 = vmatpush2.bf16.msra.mxu0 %v535
    %773 = vmatprep.subr.bf16.mxu0 %v530
    %774 = vmatpush2.bf16.msra.mxu0 %v529
    %775 = vmatprep.subr.bf16.mxu0 %v524
    %776 = vmatpush2.bf16.msra.mxu0 %v523
    %777 = vmatprep.mubr.bf16.mxu0 %v86
    %778 = vmatmul.mubr.bf16.gmra.mxu0 %v85
    %v779 = vpop.f32.mrf.mxu0
    %v780 = vadd.f32 0.0, %v779
    %v781 = vpop.f32.mrf.mxu0
    %v782 = vadd.f32 0.0, %v781
    %v783 = vpop.f32.mrf.mxu0
    %v784 = vpop.f32.mrf.mxu0
    %785 = vdwg.mxu0
    %v786 = vld [vmem:[%s3] sm:$0x3]
    %v788 = vlaneseq
    %v789 = vshrl.u32 %v788, 7
    %v790 = vsub.s32 0, %v789
    %v791 = vrot.slane %v786, %v790
    %v792 = vlaneseq
    %v793 = vshrl.u32 %v792, 7
    %v794 = vsub.s32 1, %v793
    %v795 = vrot.slane %v786, %v794
    %v798 = vadd.f32 %v698, %v791
    %v799 = vadd.f32 %v700, %v795
    %v800 = vld [vmem:[%s4] sm:$0x3]
    %v802 = vlaneseq
    %v803 = vshrl.u32 %v802, 7
    %v804 = vsub.s32 0, %v803
    %v805 = vrot.slane %v800, %v804
    %v806 = vlaneseq
    %v807 = vshrl.u32 %v806, 7
    %v808 = vsub.s32 1, %v807
    %v809 = vrot.slane %v800, %v808
    %v812 = vadd.f32 %v780, %v805
    %v813 = vadd.f32 %v782, %v809
    %v814 = vlaneseq
    %v815 = vand.u32 %v814, 127
    %v816 = vadd.s32 %v815, 128
    %vm817 = vcmp.lt.s32.totalorder %v815, 200
    %vm818 = vcmp.lt.s32.totalorder %v816, 200
    %v819 = vsel %vm817, 1, 0
    %v820 = vsel %vm818, 1, 0
    %vm821 = vcmp.eq.s32.totalorder %v819, 1
    %vm822 = vcmp.eq.s32.totalorder %v820, 1
    %v823 = vsel %vm821, %v798, -1e+30
    %v824 = vsel %vm822, %v799, -1e+30
    %v825 = vmax.f32 %v823, %v824
    %826 = vmax.xlane.f32.xlu0 %v825
    %v827 = vpop.xlane.xlu0 %826
    %v828 = vsub.f32 %v823, %v827
    %v829 = vsub.f32 %v824, %v827
    %v830 = vmul.f32 %v828, 1.442695
    %v831 = vpow.pop %v830
    %v832 = vmul.f32 %v829, 1.442695
    %v833 = vpow.pop %v832
    %v834 = vadd.f32 %v831, %v833
    %835 = vadd.xlane.f32.xlu0 %v834
    %v836 = vpop.xlane.xlu0 %835
    %v837 = vrcp.pop %v836
    %v838 = vmul.f32 %v831, %v837
    %v839 = vmul.f32 %v833, %v837
    %840 = vst [vmem:[#allocation11] sm:$0xff] %v838
    %841 = vst [vmem:[#allocation11 + $0x8] sm:$0xff] %v839
    %v842 = vpack.c.bf16 %v838, %v838
    %v843 = vpack.c.bf16 %v839, %v839
    %v844 = vld [vmem:[#allocation7] sm:$0xff]
    %v845 = vld [vmem:[#allocation7 + $0x8] sm:$0xff]
    %v846 = vld [vmem:[#allocation7 + $0x10] sm:$0xff]
    %v847 = vld [vmem:[#allocation7 + $0x18] sm:$0xff]
    %v848 = vld [vmem:[#allocation7 + $0x20] sm:$0xff]
    %v849 = vld [vmem:[#allocation7 + $0x28] sm:$0xff]
    %v850 = vld [vmem:[#allocation7 + $0x30] sm:$0xff]
    %v851 = vld [vmem:[#allocation7 + $0x38] sm:$0xff]
    %v852 = vld [vmem:[#allocation7 + $0x40] sm:$0xff]
    %v853 = vld [vmem:[#allocation7 + $0x48] sm:$0xff]
    %v854 = vld [vmem:[#allocation7 + $0x50] sm:$0xff]
    %v855 = vld [vmem:[#allocation7 + $0x58] sm:$0xff]
    %v856 = vld [vmem:[#allocation7 + $0x60] sm:$0xff]
    %v857 = vld [vmem:[#allocation7 + $0x68] sm:$0xff]
    %v858 = vld [vmem:[#allocation7 + $0x70] sm:$0xff]
    %v859 = vld [vmem:[#allocation7 + $0x78] sm:$0xff]
    %v860 = vld [vmem:[#allocation7 + $0x80] sm:$0xff]
    %v861 = vld [vmem:[#allocation7 + $0x88] sm:$0xff]
    %v862 = vld [vmem:[#allocation7 + $0x90] sm:$0xff]
    %v863 = vld [vmem:[#allocation7 + $0x98] sm:$0xff]
    %v864 = vld [vmem:[#allocation7 + $0xa0] sm:$0xff]
    %v865 = vld [vmem:[#allocation7 + $0xa8] sm:$0xff]
    %v866 = vld [vmem:[#allocation7 + $0xb0] sm:$0xff]
    %v867 = vld [vmem:[#allocation7 + $0xb8] sm:$0xff]
    %v868 = vld [vmem:[#allocation7 + $0xc0] sm:$0xff]
    %v869 = vld [vmem:[#allocation7 + $0xc8] sm:$0xff]
    %v870 = vld [vmem:[#allocation7 + $0xd0] sm:$0xff]
    %v871 = vld [vmem:[#allocation7 + $0xd8] sm:$0xff]
    %v872 = vld [vmem:[#allocation7 + $0xe0] sm:$0xff]
    %v873 = vld [vmem:[#allocation7 + $0xe8] sm:$0xff]
    %v874 = vld [vmem:[#allocation7 + $0xf0] sm:$0xff]
    %v875 = vld [vmem:[#allocation7 + $0xf8] sm:$0xff]
    %v908 = vunpack.c.l.b16 %v844
    %v909 = vunpack.c.h.b16 %v844
    %v910 = vunpack.c.l.b16 %v845
    %v911 = vunpack.c.h.b16 %v845
    %v912 = vunpack.c.l.b16 %v846
    %v913 = vunpack.c.h.b16 %v846
    %v914 = vunpack.c.l.b16 %v847
    %v915 = vunpack.c.h.b16 %v847
    %v916 = vunpack.c.l.b16 %v848
    %v917 = vunpack.c.h.b16 %v848
    %v918 = vunpack.c.l.b16 %v849
    %v919 = vunpack.c.h.b16 %v849
    %v920 = vunpack.c.l.b16 %v850
    %v921 = vunpack.c.h.b16 %v850
    %v922 = vunpack.c.l.b16 %v851
    %v923 = vunpack.c.h.b16 %v851
    %v924 = vunpack.c.l.b16 %v852
    %v925 = vunpack.c.h.b16 %v852
    %v926 = vunpack.c.l.b16 %v853
    %v927 = vunpack.c.h.b16 %v853
    %v928 = vunpack.c.l.b16 %v854
    %v929 = vunpack.c.h.b16 %v854
    %v930 = vunpack.c.l.b16 %v855
    %v931 = vunpack.c.h.b16 %v855
    %v932 = vunpack.c.l.b16 %v856
    %v933 = vunpack.c.h.b16 %v856
    %v934 = vunpack.c.l.b16 %v857
    %v935 = vunpack.c.h.b16 %v857
    %v936 = vunpack.c.l.b16 %v858
    %v937 = vunpack.c.h.b16 %v858
    %v938 = vunpack.c.l.b16 %v859
    %v939 = vunpack.c.h.b16 %v859
    %v940 = vunpack.c.l.b16 %v860
    %v941 = vunpack.c.h.b16 %v860
    %v942 = vunpack.c.l.b16 %v861
    %v943 = vunpack.c.h.b16 %v861
    %v944 = vunpack.c.l.b16 %v862
    %v945 = vunpack.c.h.b16 %v862
    %v946 = vunpack.c.l.b16 %v863
    %v947 = vunpack.c.h.b16 %v863
    %v948 = vunpack.c.l.b16 %v864
    %v949 = vunpack.c.h.b16 %v864
    %v950 = vunpack.c.l.b16 %v865
    %v951 = vunpack.c.h.b16 %v865
    %v952 = vunpack.c.l.b16 %v866
    %v953 = vunpack.c.h.b16 %v866
    %v954 = vunpack.c.l.b16 %v867
    %v955 = vunpack.c.h.b16 %v867
    %v956 = vunpack.c.l.b16 %v868
    %v957 = vunpack.c.h.b16 %v868
    %v958 = vunpack.c.l.b16 %v869
    %v959 = vunpack.c.h.b16 %v869
    %v960 = vunpack.c.l.b16 %v870
    %v961 = vunpack.c.h.b16 %v870
    %v962 = vunpack.c.l.b16 %v871
    %v963 = vunpack.c.h.b16 %v871
    %v964 = vunpack.c.l.b16 %v872
    %v965 = vunpack.c.h.b16 %v872
    %v966 = vunpack.c.l.b16 %v873
    %v967 = vunpack.c.h.b16 %v873
    %v968 = vunpack.c.l.b16 %v874
    %v969 = vunpack.c.h.b16 %v874
    %v970 = vunpack.c.l.b16 %v875
    %v971 = vunpack.c.h.b16 %v875
    %v972 = vpack.c.b16 %v910, %v908
    %v973 = vpack.c.b16 %v911, %v909
    %v974 = vpack.c.b16 %v914, %v912
    %v975 = vpack.c.b16 %v915, %v913
    %v976 = vpack.c.b16 %v918, %v916
    %v977 = vpack.c.b16 %v919, %v917
    %v978 = vpack.c.b16 %v922, %v920
    %v979 = vpack.c.b16 %v923, %v921
    %v980 = vpack.c.b16 %v926, %v924
    %v981 = vpack.c.b16 %v927, %v925
    %v982 = vpack.c.b16 %v930, %v928
    %v983 = vpack.c.b16 %v931, %v929
    %v984 = vpack.c.b16 %v934, %v932
    %v985 = vpack.c.b16 %v935, %v933
    %v986 = vpack.c.b16 %v938, %v936
    %v987 = vpack.c.b16 %v939, %v937
    %v988 = vpack.c.b16 %v942, %v940
    %v989 = vpack.c.b16 %v943, %v941
    %v990 = vpack.c.b16 %v946, %v944
    %v991 = vpack.c.b16 %v947, %v945
    %v992 = vpack.c.b16 %v950, %v948
    %v993 = vpack.c.b16 %v951, %v949
    %v994 = vpack.c.b16 %v954, %v952
    %v995 = vpack.c.b16 %v955, %v953
    %v996 = vpack.c.b16 %v958, %v956
    %v997 = vpack.c.b16 %v959, %v957
    %v998 = vpack.c.b16 %v962, %v960
    %v999 = vpack.c.b16 %v963, %v961
    %v1000 = vpack.c.b16 %v966, %v964
    %v1001 = vpack.c.b16 %v967, %v965
    %v1002 = vpack.c.b16 %v970, %v968
    %v1003 = vpack.c.b16 %v971, %v969
    %1036 = vmatprep.subr.bf16.mxu0 %v987
    %1037 = vmatpush1.bf16.msra.mxu0 %v986
    %1038 = vmatprep.subr.bf16.mxu0 %v985
    %1039 = vmatpush1.bf16.msra.mxu0 %v984
    %1040 = vmatprep.subr.bf16.mxu0 %v983
    %1041 = vmatpush1.bf16.msra.mxu0 %v982
    %1042 = vmatprep.subr.bf16.mxu0 %v981
    %1043 = vmatpush1.bf16.msra.mxu0 %v980
    %1044 = vmatprep.subr.bf16.mxu0 %v979
    %1045 = vmatpush1.bf16.msra.mxu0 %v978
    %1046 = vmatprep.subr.bf16.mxu0 %v977
    %1047 = vmatpush1.bf16.msra.mxu0 %v976
    %1048 = vmatprep.subr.bf16.mxu0 %v975
    %1049 = vmatpush1.bf16.msra.mxu0 %v974
    %1050 = vmatprep.subr.bf16.mxu0 %v973
    %1051 = vmatpush1.bf16.msra.mxu0 %v972
    %1052 = vmatprep.subr.bf16.mxu0 %v1003
    %1053 = vmatpush2.bf16.msra.mxu0 %v1002
    %1054 = vmatprep.subr.bf16.mxu0 %v1001
    %1055 = vmatpush2.bf16.msra.mxu0 %v1000
    %1056 = vmatprep.subr.bf16.mxu0 %v999
    %1057 = vmatpush2.bf16.msra.mxu0 %v998
    %1058 = vmatprep.subr.bf16.mxu0 %v997
    %1059 = vmatpush2.bf16.msra.mxu0 %v996
    %1060 = vmatprep.subr.bf16.mxu0 %v995
    %1061 = vmatpush2.bf16.msra.mxu0 %v994
    %1062 = vmatprep.subr.bf16.mxu0 %v993
    %1063 = vmatpush2.bf16.msra.mxu0 %v992
    %1064 = vmatprep.subr.bf16.mxu0 %v991
    %1065 = vmatpush2.bf16.msra.mxu0 %v990
    %1066 = vmatprep.subr.bf16.mxu0 %v989
    %1067 = vmatpush2.bf16.msra.mxu0 %v988
    %1068 = vmatprep.mubr.bf16.mxu0 %v843
    %1069 = vmatmul.mubr.bf16.gmra.mxu0 %v842
    %v1070 = vpop.f32.mrf.mxu0
    %v1071 = vadd.f32 0.0, %v1070
    %v1072 = vpop.f32.mrf.mxu0
    %v1073 = vadd.f32 0.0, %v1072
    %v1074 = vpop.f32.mrf.mxu0
    %v1075 = vpop.f32.mrf.mxu0
    %1076 = vdwg.mxu0
    %v1077 = vtanh.pop %v812
    %v1078 = vtanh.pop %v813
    %v1079 = vmul.f32 %v83, %v83
    %v1080 = vmul.f32 %v84, %v84
    %v1081 = vadd.f32 %v1079, %v1080
    %1082 = vadd.xlane.f32.xlu0 %v1081
    %v1083 = vpop.xlane.xlu0 %1082
    %v1084 = vld [vmem:[%s5] sm:$0x3]
    %v1086 = vlaneseq
    %v1087 = vshrl.u32 %v1086, 7
    %v1088 = vsub.s32 0, %v1087
    %v1089 = vrot.slane %v1084, %v1088
    %v1090 = vlaneseq
    %v1091 = vshrl.u32 %v1090, 7
    %v1092 = vsub.s32 1, %v1091
    %v1093 = vrot.slane %v1084, %v1092
    %v1096 = vadd.f32 %v1083, %v1089
    %v1097 = vadd.f32 %v1083, %v1093
    %v1098 = vmul.f32 %v739, 2.0
    %v1099 = vmul.f32 %v741, 2.0
    %v1100 = vsub.f32 %v1096, %v1098
    %v1101 = vsub.f32 %v1097, %v1099
    %v1102 = vsel %vm821, %v1100, inf
    %v1103 = vsel %vm822, %v1101, inf
    %v1104 = vmin.f32 %v1102, %v1103
    %1105 = vmin.xlane.f32.xlu0 %v1104
    %v1106 = vpop.xlane.xlu0 %1105
    %v1107 = vmax.f32 %v1106, 1e-12
    %v1108 = vrsqrt.pop %v1107
    %v1109 = vmul.f32 %v1108, 10.0
    %v1110 = vmul.f32 %v1077, %v1071
    %v1111 = vmul.f32 %v1078, %v1073
    %v1112 = vadd.f32 %v83, %v1110
    %v1113 = vadd.f32 %v84, %v1111
    %v1114 = vmul.f32 %v1109, %v1112
    %v1115 = vmul.f32 %v1109, %v1113
    %v1116 = vmul.f32 %v1114, %v1114
    %v1117 = vmul.f32 %v1115, %v1115
    %v1118 = vadd.f32 %v1116, %v1117
    %1119 = vadd.xlane.f32.xlu0 %v1118
    %v1120 = vpop.xlane.xlu0 %1119
    %v1121 = vrsqrt.pop %v1120
    %v1122 = vmul.f32 %v1120, %v1121
    %vm1123 = vcmp.eq.f32.partialorder %v1120, inf
    %v1124 = vsel %vm1123, %v1120, %v1122
    %vm1125 = vcmp.eq.f32.partialorder %v1120, 0.0
    %v1126 = vand.u32 %v1120, 2147483648
    %v1127 = vsel %vm1125, %v1126, %v1124
    %v1128 = vadd.f32 %v1127, 1.0
    %v1129 = vrcp.pop %v1128
    %v1130 = vmul.f32 16.0, %v1129
    %v1131 = vmul.f32 %v1114, %v1130
    %v1132 = vmul.f32 %v1115, %v1130
    %v1133 = vpack.c.bf16 %v1131, %v1131
    %v1134 = vpack.c.bf16 %v1132, %v1132
    %v1135 = vld [vmem:[#allocation8] sm:$0xff]
    %v1136 = vld [vmem:[#allocation8 + $0x8] sm:$0xff]
    %v1137 = vld [vmem:[#allocation8 + $0x10] sm:$0xff]
    %v1138 = vld [vmem:[#allocation8 + $0x18] sm:$0xff]
    %v1139 = vld [vmem:[#allocation8 + $0x20] sm:$0xff]
    %v1140 = vld [vmem:[#allocation8 + $0x28] sm:$0xff]
    %v1141 = vld [vmem:[#allocation8 + $0x30] sm:$0xff]
    %v1142 = vld [vmem:[#allocation8 + $0x38] sm:$0xff]
    %v1143 = vld [vmem:[#allocation8 + $0x40] sm:$0xff]
    %v1144 = vld [vmem:[#allocation8 + $0x48] sm:$0xff]
    %v1145 = vld [vmem:[#allocation8 + $0x50] sm:$0xff]
    %v1146 = vld [vmem:[#allocation8 + $0x58] sm:$0xff]
    %v1147 = vld [vmem:[#allocation8 + $0x60] sm:$0xff]
    %v1148 = vld [vmem:[#allocation8 + $0x68] sm:$0xff]
    %v1149 = vld [vmem:[#allocation8 + $0x70] sm:$0xff]
    %v1150 = vld [vmem:[#allocation8 + $0x78] sm:$0xff]
    %v1151 = vld [vmem:[#allocation8 + $0x80] sm:$0xff]
    %v1152 = vld [vmem:[#allocation8 + $0x88] sm:$0xff]
    %v1153 = vld [vmem:[#allocation8 + $0x90] sm:$0xff]
    %v1154 = vld [vmem:[#allocation8 + $0x98] sm:$0xff]
    %v1155 = vld [vmem:[#allocation8 + $0xa0] sm:$0xff]
    %v1156 = vld [vmem:[#allocation8 + $0xa8] sm:$0xff]
    %v1157 = vld [vmem:[#allocation8 + $0xb0] sm:$0xff]
    %v1158 = vld [vmem:[#allocation8 + $0xb8] sm:$0xff]
    %v1159 = vld [vmem:[#allocation8 + $0xc0] sm:$0xff]
    %v1160 = vld [vmem:[#allocation8 + $0xc8] sm:$0xff]
    %v1161 = vld [vmem:[#allocation8 + $0xd0] sm:$0xff]
    %v1162 = vld [vmem:[#allocation8 + $0xd8] sm:$0xff]
    %v1163 = vld [vmem:[#allocation8 + $0xe0] sm:$0xff]
    %v1164 = vld [vmem:[#allocation8 + $0xe8] sm:$0xff]
    %v1165 = vld [vmem:[#allocation8 + $0xf0] sm:$0xff]
    %v1166 = vld [vmem:[#allocation8 + $0xf8] sm:$0xff]
    %v1199 = vunpack.c.l.b16 %v1135
    %v1200 = vunpack.c.h.b16 %v1135
    %v1201 = vunpack.c.l.b16 %v1136
    %v1202 = vunpack.c.h.b16 %v1136
    %v1203 = vunpack.c.l.b16 %v1137
    %v1204 = vunpack.c.h.b16 %v1137
    %v1205 = vunpack.c.l.b16 %v1138
    %v1206 = vunpack.c.h.b16 %v1138
    %v1207 = vunpack.c.l.b16 %v1139
    %v1208 = vunpack.c.h.b16 %v1139
    %v1209 = vunpack.c.l.b16 %v1140
    %v1210 = vunpack.c.h.b16 %v1140
    %v1211 = vunpack.c.l.b16 %v1141
    %v1212 = vunpack.c.h.b16 %v1141
    %v1213 = vunpack.c.l.b16 %v1142
    %v1214 = vunpack.c.h.b16 %v1142
    %v1215 = vunpack.c.l.b16 %v1143
    %v1216 = vunpack.c.h.b16 %v1143
    %v1217 = vunpack.c.l.b16 %v1144
    %v1218 = vunpack.c.h.b16 %v1144
    %v1219 = vunpack.c.l.b16 %v1145
    %v1220 = vunpack.c.h.b16 %v1145
    %v1221 = vunpack.c.l.b16 %v1146
    %v1222 = vunpack.c.h.b16 %v1146
    %v1223 = vunpack.c.l.b16 %v1147
    %v1224 = vunpack.c.h.b16 %v1147
    %v1225 = vunpack.c.l.b16 %v1148
    %v1226 = vunpack.c.h.b16 %v1148
    %v1227 = vunpack.c.l.b16 %v1149
    %v1228 = vunpack.c.h.b16 %v1149
    %v1229 = vunpack.c.l.b16 %v1150
    %v1230 = vunpack.c.h.b16 %v1150
    %v1231 = vunpack.c.l.b16 %v1151
    %v1232 = vunpack.c.h.b16 %v1151
    %v1233 = vunpack.c.l.b16 %v1152
    %v1234 = vunpack.c.h.b16 %v1152
    %v1235 = vunpack.c.l.b16 %v1153
    %v1236 = vunpack.c.h.b16 %v1153
    %v1237 = vunpack.c.l.b16 %v1154
    %v1238 = vunpack.c.h.b16 %v1154
    %v1239 = vunpack.c.l.b16 %v1155
    %v1240 = vunpack.c.h.b16 %v1155
    %v1241 = vunpack.c.l.b16 %v1156
    %v1242 = vunpack.c.h.b16 %v1156
    %v1243 = vunpack.c.l.b16 %v1157
    %v1244 = vunpack.c.h.b16 %v1157
    %v1245 = vunpack.c.l.b16 %v1158
    %v1246 = vunpack.c.h.b16 %v1158
    %v1247 = vunpack.c.l.b16 %v1159
    %v1248 = vunpack.c.h.b16 %v1159
    %v1249 = vunpack.c.l.b16 %v1160
    %v1250 = vunpack.c.h.b16 %v1160
    %v1251 = vunpack.c.l.b16 %v1161
    %v1252 = vunpack.c.h.b16 %v1161
    %v1253 = vunpack.c.l.b16 %v1162
    %v1254 = vunpack.c.h.b16 %v1162
    %v1255 = vunpack.c.l.b16 %v1163
    %v1256 = vunpack.c.h.b16 %v1163
    %v1257 = vunpack.c.l.b16 %v1164
    %v1258 = vunpack.c.h.b16 %v1164
    %v1259 = vunpack.c.l.b16 %v1165
    %v1260 = vunpack.c.h.b16 %v1165
    %v1261 = vunpack.c.l.b16 %v1166
    %v1262 = vunpack.c.h.b16 %v1166
    %v1263 = vpack.c.b16 %v1201, %v1199
    %v1264 = vpack.c.b16 %v1202, %v1200
    %v1265 = vpack.c.b16 %v1205, %v1203
    %v1266 = vpack.c.b16 %v1206, %v1204
    %v1267 = vpack.c.b16 %v1209, %v1207
    %v1268 = vpack.c.b16 %v1210, %v1208
    %v1269 = vpack.c.b16 %v1213, %v1211
    %v1270 = vpack.c.b16 %v1214, %v1212
    %v1271 = vpack.c.b16 %v1217, %v1215
    %v1272 = vpack.c.b16 %v1218, %v1216
    %v1273 = vpack.c.b16 %v1221, %v1219
    %v1274 = vpack.c.b16 %v1222, %v1220
    %v1275 = vpack.c.b16 %v1225, %v1223
    %v1276 = vpack.c.b16 %v1226, %v1224
    %v1277 = vpack.c.b16 %v1229, %v1227
    %v1278 = vpack.c.b16 %v1230, %v1228
    %v1279 = vpack.c.b16 %v1233, %v1231
    %v1280 = vpack.c.b16 %v1234, %v1232
    %v1281 = vpack.c.b16 %v1237, %v1235
    %v1282 = vpack.c.b16 %v1238, %v1236
    %v1283 = vpack.c.b16 %v1241, %v1239
    %v1284 = vpack.c.b16 %v1242, %v1240
    %v1285 = vpack.c.b16 %v1245, %v1243
    %v1286 = vpack.c.b16 %v1246, %v1244
    %v1287 = vpack.c.b16 %v1249, %v1247
    %v1288 = vpack.c.b16 %v1250, %v1248
    %v1289 = vpack.c.b16 %v1253, %v1251
    %v1290 = vpack.c.b16 %v1254, %v1252
    %v1291 = vpack.c.b16 %v1257, %v1255
    %v1292 = vpack.c.b16 %v1258, %v1256
    %v1293 = vpack.c.b16 %v1261, %v1259
    %v1294 = vpack.c.b16 %v1262, %v1260
    %1327 = vmatprep.subr.bf16.mxu0 %v1278
    %1328 = vmatpush1.bf16.msra.mxu0 %v1277
    %1329 = vmatprep.subr.bf16.mxu0 %v1276
    %1330 = vmatpush1.bf16.msra.mxu0 %v1275
    %1331 = vmatprep.subr.bf16.mxu0 %v1274
    %1332 = vmatpush1.bf16.msra.mxu0 %v1273
    %1333 = vmatprep.subr.bf16.mxu0 %v1272
    %1334 = vmatpush1.bf16.msra.mxu0 %v1271
    %1335 = vmatprep.subr.bf16.mxu0 %v1270
    %1336 = vmatpush1.bf16.msra.mxu0 %v1269
    %1337 = vmatprep.subr.bf16.mxu0 %v1268
    %1338 = vmatpush1.bf16.msra.mxu0 %v1267
    %1339 = vmatprep.subr.bf16.mxu0 %v1266
    %1340 = vmatpush1.bf16.msra.mxu0 %v1265
    %1341 = vmatprep.subr.bf16.mxu0 %v1264
    %1342 = vmatpush1.bf16.msra.mxu0 %v1263
    %1343 = vmatprep.subr.bf16.mxu0 %v1294
    %1344 = vmatpush2.bf16.msra.mxu0 %v1293
    %1345 = vmatprep.subr.bf16.mxu0 %v1292
    %1346 = vmatpush2.bf16.msra.mxu0 %v1291
    %1347 = vmatprep.subr.bf16.mxu0 %v1290
    %1348 = vmatpush2.bf16.msra.mxu0 %v1289
    %1349 = vmatprep.subr.bf16.mxu0 %v1288
    %1350 = vmatpush2.bf16.msra.mxu0 %v1287
    %1351 = vmatprep.subr.bf16.mxu0 %v1286
    %1352 = vmatpush2.bf16.msra.mxu0 %v1285
    %1353 = vmatprep.subr.bf16.mxu0 %v1284
    %1354 = vmatpush2.bf16.msra.mxu0 %v1283
    %1355 = vmatprep.subr.bf16.mxu0 %v1282
    %1356 = vmatpush2.bf16.msra.mxu0 %v1281
    %1357 = vmatprep.subr.bf16.mxu0 %v1280
    %1358 = vmatpush2.bf16.msra.mxu0 %v1279
    %1359 = vmatprep.mubr.bf16.mxu0 %v1134
    %1360 = vmatmul.mubr.bf16.gmra.mxu0 %v1133
    %v1361 = vpop.f32.mrf.mxu0
    %v1362 = vadd.f32 0.0, %v1361
    %v1363 = vpop.f32.mrf.mxu0
    %v1364 = vadd.f32 0.0, %v1363
    %v1365 = vpop.f32.mrf.mxu0
    %v1366 = vpop.f32.mrf.mxu0
    %1367 = vdwg.mxu0
    %1368 = vst [vmem:[#allocation10] sm:$0xff] %v1362
    %1369 = vst [vmem:[#allocation10 + $0x8] sm:$0xff] %v1364
    // Predicated region
    $region46: #{tpu_custom_call.1} parent=1 // pred_check
      _
    $region47: #{tpu_custom_call.1} parent=1 // pred_check_branch
      %1371 = sbr.rel (0) target = $region49
    $region48: #{tpu_custom_call.1} parent=1 // pred_region
      %s1373 = ssub.s32 256, 256
      %1374 = vsyncadd [#allocation4], %s1373
      %s1376 = sshll.u32 [#allocation10], 4
      %s1377 = int_to_ptr.vmem [resolvable:$true] %s1376
      %1379 = dma.vmem_to_hbm [thread:$0]  %s1377, 256, %s7, [#allocation4]
    $region49: #{tpu_custom_call.1} parent=1 // pred_fallthru
      _
    // Predicated region
    $region50: #{tpu_custom_call.1} parent=1 // pred_check
      _
    $region51: #{tpu_custom_call.1} parent=1 // pred_check_branch
      %1381 = sbr.rel (0) target = $region53
    $region52: #{tpu_custom_call.1} parent=1 // pred_region
      %s1383 = ssub.s32 256, 256
      %1384 = vsyncadd [#allocation12], %s1383
      %s1386 = sshll.u32 [#allocation11], 4
      %s1387 = int_to_ptr.vmem [resolvable:$true] %s1386
      %1389 = dma.vmem_to_hbm [thread:$0]  %s1387, 256, %s8, [#allocation12]
    $region53: #{tpu_custom_call.1} parent=1 // pred_fallthru
      _
    // Predicated region
    $region54: #{tpu_custom_call.1} parent=1 // pred_check
      _
    $region55: #{tpu_custom_call.1} parent=1 // pred_check_branch
      %1391 = sbr.rel (0) target = $region57
    $region56: #{tpu_custom_call.1} parent=1 // pred_region
      %1392 = dma.done [#allocation4], 256
    $region57: #{tpu_custom_call.1} parent=1 // pred_fallthru
      _
    // Predicated region
    $region58: #{tpu_custom_call.1} parent=1 // pred_check
      _
    $region59: #{tpu_custom_call.1} parent=1 // pred_check_branch
      %1394 = sbr.rel (0) target = $region61
    $region60: #{tpu_custom_call.1} parent=1 // pred_region
      %1395 = dma.done [#allocation12], 256
    $region61: #{tpu_custom_call.1} parent=1 // pred_fallthru
      _
    %1396 = vsyncpa [#allocation3], 1
    %1397 = vsyncpa [#allocation6], 1
    %1398 = vsyncpa [#allocation9], 1
    %1399 = vsyncpa [#allocation4], 1
    %1400 = vsyncpa [#allocation12], 1

</llo_original>
